<compile_context>
chip_gen: v6e
topology: v6e:2x2x1
jax: 0.10.0
libtpu: 0.0.40
codegen_flags: <defaults>
</compile_context>

<pallas_src>
import functools

import jax
import jax.numpy as jnp
from jax.experimental import pallas as pl
from jax.experimental.pallas import tpu as pltpu


def _spatial_gate_kernel(x_ref, m_ref, w0_ref, t0_ref, w1_ref, t1_ref,
                         w2_ref, t2_ref, w3_ref, t3_ref, o_ref, patches_ref,
                         *, shifts, CP):
    L = x_ref.shape[1]                              # B*HW lanes (static)
    x = x_ref[...]                                  # (C, L) f32, lane-dense
    masks = m_ref[...]                              # (9, L) resident validity table

    # ---- stage 0: 1x1 reduce conv + folded BN + ReLU -> (CP, L) -------------
    h = jnp.dot(w0_ref[...], x, preferred_element_type=jnp.float32) + t0_ref[...]
    h = jnp.maximum(h, 0.0)

    def dilated_bn_relu(z, w_r, t_r):
        # z: (CP, L).  Build im2col rows into resident VMEM scratch with lane
        # rolls (XLU) + precomputed masks, then one (CP, 9*CP) @ (9*CP, L) MXU
        # matmul; BN + bias folded into w_r / t_r.
        for t, shift in enumerate(shifts):
            if shift == 0:
                patches_ref[t * CP:(t + 1) * CP, :] = z      # center tap: all valid
            else:
                shifted = pltpu.roll(z, shift=(-shift) % L, axis=1)
                patches_ref[t * CP:(t + 1) * CP, :] = shifted * masks[t:t + 1, :]
        y = jnp.dot(w_r[...], patches_ref[...], preferred_element_type=jnp.float32)
        return jnp.maximum(y + t_r[...], 0.0)

    h = dilated_bn_relu(h, w1_ref, t1_ref)
    h = dilated_bn_relu(h, w2_ref, t2_ref)

    # ---- final 1x1 conv -> 1 channel, then gate ------------------------------
    logit = jnp.dot(w3_ref[...], h, preferred_element_type=jnp.float32) + t3_ref[...]
    # exp + approx reciprocal both run on the EUP (idle slot).
    att = 1.0 + pl.reciprocal(1.0 + jnp.exp(-logit), approx=True)     # (1, L)
    o_ref[...] = (x * att).astype(o_ref.dtype)


def prepare_spatial_gate(params, *, H, W, images_per_step, dilation=4, eps=1e-5):
    """One-time host-side parameter folding + boundary-mask table.

    Call ONCE at init (outside the per-call jitted forward) so the ~10 tiny
    XLA folding ops never appear in the hot path.
    """
    HW = H * W
    C_r = params["w0"].shape[0]
    CP = max(8, ((C_r + 7) // 8) * 8)               # pad hidden channels to sublane group

    def fold_bn(conv_w, conv_b, gamma, beta, mean, var):
        s = gamma / jnp.sqrt(var + eps)
        return conv_w * s[:, None, None, None], (conv_b - mean) * s + beta

    w0f, t0 = fold_bn(params["w0"], params["b0"], params["g0"], params["be0"],
                      params["m0"], params["v0"])
    w1f, t1 = fold_bn(params["w1"], params["b1"], params["g1"], params["be1"],
                      params["m1"], params["v1"])
    w2f, t2 = fold_bn(params["w2"], params["b2"], params["g2"], params["be2"],
                      params["m2"], params["v2"])

    # 1x1 reduce conv -> (CP, C); shift -> (CP, 1)
    w0k = jnp.pad(w0f[:, :, 0, 0], ((0, CP - C_r), (0, 0)))
    t0k = jnp.pad(t0, ((0, CP - C_r),))[:, None]

    # dilated 3x3 convs -> im2col layout (CP, 9*CP); column index is
    # (kh*3 + kw)*CP + cin to match the kernel's tap-stacking order.
    def dil_w(wf, t):
        w_ = jnp.transpose(wf, (0, 2, 3, 1))                               # (Cr,3,3,Cr)
        w_ = jnp.pad(w_, ((0, CP - C_r), (0, 0), (0, 0), (0, CP - C_r)))   # (CP,3,3,CP)
        return w_.reshape(CP, 9 * CP), jnp.pad(t, ((0, CP - C_r),))[:, None]

    w1k, t1k = dil_w(w1f, t1)
    w2k, t2k = dil_w(w2f, t2)

    # final 1x1 conv (no BN) -> (1, CP), bias -> (1, 1)
    w3k = jnp.pad(params["w3"][:, :, 0, 0], ((0, 0), (0, CP - C_r)))
    t3k = params["b3"].reshape(1, 1)

    # 9 boundary-validity masks in tap order (kh*3 + kw), tiled per image so
    # cross-image wrap from the flat-lane roll stays masked.
    hh = jnp.arange(HW, dtype=jnp.int32) // W
    ww = jnp.arange(HW, dtype=jnp.int32) % W
    rows = []
    for kh in range(3):
        for kw in range(3):
            dh = (kh - 1) * dilation
            dw = (kw - 1) * dilation
            valid = ((hh + dh >= 0) & (hh + dh < H) &
                     (ww + dw >= 0) & (ww + dw < W))
            rows.append(valid.astype(jnp.float32))
    masks = jnp.tile(jnp.stack(rows, axis=0), (1, images_per_step))   # (9, B*HW)

    return dict(w0k=w0k, t0k=t0k, w1k=w1k, t1k=t1k, w2k=w2k, t2k=t2k,
                w3k=w3k, t3k=t3k, masks=masks)


def spatial_gate_forward(x, prepared, *, dilation=4, grid_steps=2):
    """x: (N, C, H, W) float32 NCHW. prepared: output of prepare_spatial_gate.

    grid_steps: number of grid steps the batch is split into.  Use >=2 on v7x
    (two TensorCores share the "parallel" axis); 1 is optimal on single-TC
    v5e/v6e.  N must be divisible by grid_steps.
    """
    N, C, H, W = x.shape
    HW = H * W
    G = grid_steps if (grid_steps >= 1 and N % grid_steps == 0) else 1
    B = N // G                                      # images per grid step
    L = B * HW                                      # lanes per step
    CP = prepared["w0k"].shape[0]
    assert prepared["masks"].shape == (9, L), (
        "prepared masks were built for a different images_per_step")
    # TODO(synk): if H*W is not a multiple of 128, pad HW host-side to avoid
    # masked partial stores (perf cliff, not a correctness issue).

    shifts = tuple((kh - 1) * dilation * W + (kw - 1) * dilation
                   for kh in range(3) for kw in range(3))

    # Lane-stack the batch: (N,C,H,W) -> (C, N*HW); image n -> lanes [n*HW,(n+1)*HW)
    xk = x.reshape(N, C, HW).transpose(1, 0, 2).reshape(C, N * HW)

    kernel = functools.partial(_spatial_gate_kernel, shifts=shifts, CP=CP)
    const = lambda g: (0, 0)                        # resident parameter blocks

    out = pl.pallas_call(
        kernel,
        out_shape=jax.ShapeDtypeStruct((C, N * HW), x.dtype),
        grid_spec=pltpu.PrefetchScalarGridSpec(
            num_scalar_prefetch=0,
            grid=(G,),                              # few big steps, not one per image
            in_specs=[
                pl.BlockSpec((C, L), lambda g: (0, g)),          # x chunk
                pl.BlockSpec((9, L), const),                     # boundary masks
                pl.BlockSpec(prepared["w0k"].shape, const),
                pl.BlockSpec(prepared["t0k"].shape, const),
                pl.BlockSpec(prepared["w1k"].shape, const),
                pl.BlockSpec(prepared["t1k"].shape, const),
                pl.BlockSpec(prepared["w2k"].shape, const),
                pl.BlockSpec(prepared["t2k"].shape, const),
                pl.BlockSpec(prepared["w3k"].shape, const),
                pl.BlockSpec(prepared["t3k"].shape, const),
            ],
            out_specs=pl.BlockSpec((C, L), lambda g: (0, g)),
            scratch_shapes=[pltpu.VMEM((9 * CP, L), jnp.float32)],  # im2col patches
        ),
        compiler_params=pltpu.CompilerParams(
            dimension_semantics=("parallel",),      # lets v7x use both TCs
        ),
    )(xk, prepared["masks"], prepared["w0k"], prepared["t0k"],
      prepared["w1k"], prepared["t1k"], prepared["w2k"], prepared["t2k"],
      prepared["w3k"], prepared["t3k"])

    return out.reshape(C, N, HW).transpose(1, 0, 2).reshape(N, C, H, W)


if __name__ == "__main__":
    gate_channel, reduction_ratio, dilation = 32, 16, 4
    N, H, W = 4, 16, 16
    grid_steps = 2                                  # >=2 for v7x; set 1 on v5e/v6e
    C_r = gate_channel // reduction_ratio

    key = jax.random.PRNGKey(0)
    keys = jax.random.split(key, 8)
    x = jax.random.normal(keys[0], (N, gate_channel, H, W), dtype=jnp.float32)

    def conv_params(k, cout, cin, ksz):
        kw_, kb_ = jax.random.split(k)
        w = jax.random.normal(kw_, (cout, cin, ksz, ksz), jnp.float32) / jnp.sqrt(cin * ksz * ksz)
        b = 0.1 * jax.random.normal(kb_, (cout,), jnp.float32)
        return w, b

    def bn_params(k, c):
        k1, k2, k3, k4 = jax.random.split(k, 4)
        g = 1.0 + 0.1 * jax.random.normal(k1, (c,), jnp.float32)
        be = 0.1 * jax.random.normal(k2, (c,), jnp.float32)
        m = 0.1 * jax.random.normal(k3, (c,), jnp.float32)
        v = jax.random.uniform(k4, (c,), jnp.float32, minval=0.5, maxval=1.5)
        return g, be, m, v

    w0, b0 = conv_params(keys[1], C_r, gate_channel, 1)
    g0, be0, m0, v0 = bn_params(keys[2], C_r)
    w1, b1 = conv_params(keys[3], C_r, C_r, 3)
    g1, be1, m1, v1 = bn_params(keys[4], C_r)
    w2, b2 = conv_params(keys[5], C_r, C_r, 3)
    g2, be2, m2, v2 = bn_params(keys[6], C_r)
    w3, b3 = conv_params(keys[7], 1, C_r, 1)

    params = dict(w0=w0, b0=b0, g0=g0, be0=be0, m0=m0, v0=v0,
                  w1=w1, b1=b1, g1=g1, be1=be1, m1=m1, v1=v1,
                  w2=w2, b2=b2, g2=g2, be2=be2, m2=m2, v2=v2,
                  w3=w3, b3=b3)

    # One-time parameter folding + mask table (hoisted out of the hot path).
    prepared = prepare_spatial_gate(params, H=H, W=W,
                                    images_per_step=N // grid_steps,
                                    dilation=dilation)

    fwd = jax.jit(functools.partial(spatial_gate_forward, dilation=dilation,
                                    grid_steps=grid_steps))
    out = jax.block_until_ready(fwd(x, prepared))

    # ---- reference (plain JAX / XLA, inference-mode BN) ----------------------
    def conv(x_, w_, b_, dil_=1, pad_=0):
        y = jax.lax.conv_general_dilated(
            x_, w_, window_strides=(1, 1),
            padding=((pad_, pad_), (pad_, pad_)),
            rhs_dilation=(dil_, dil_),
            dimension_numbers=("NCHW", "OIHW", "NCHW"))
        return y + b_[None, :, None, None]

    def bn(x_, g_, be_, m_, v_, eps=1e-5):
        s = (g_ / jnp.sqrt(v_ + eps))[None, :, None, None]
        return (x_ - m_[None, :, None, None]) * s + be_[None, :, None, None]

    h = jax.nn.relu(bn(conv(x, w0, b0), g0, be0, m0, v0))
    h = jax.nn.relu(bn(conv(h, w1, b1, dilation, dilation), g1, be1, m1, v1))
    h = jax.nn.relu(bn(conv(h, w2, b2, dilation, dilation), g2, be2, m2, v2))
    att = 1.0 + jax.nn.sigmoid(conv(h, w3, b3))
    ref = att * x

    assert out.shape == ref.shape == (N, gate_channel, H, W)
    # approx EUP reciprocal in the sigmoid adds ~1e-4 relative error on the gate.
    err = float(jnp.max(jnp.abs(out - ref)))
    assert jnp.allclose(out, ref, atol=5e-3, rtol=5e-3), err

    print("KERNEL_OK")
</pallas_src>

<mosaic_0001>
module attributes {stable_mosaic.version = 11 : i64} {
  func.func @_spatial_gate_kernel(%arg0: i32, %arg1: memref<32x512xf32, #tpu.memory_space<vmem>>, %arg2: memref<9x512xf32, #tpu.memory_space<vmem>>, %arg3: memref<8x32xf32, #tpu.memory_space<vmem>>, %arg4: memref<8x1xf32, #tpu.memory_space<vmem>>, %arg5: memref<8x72xf32, #tpu.memory_space<vmem>>, %arg6: memref<8x1xf32, #tpu.memory_space<vmem>>, %arg7: memref<8x72xf32, #tpu.memory_space<vmem>>, %arg8: memref<8x1xf32, #tpu.memory_space<vmem>>, %arg9: memref<1x8xf32, #tpu.memory_space<vmem>>, %arg10: memref<1x1xf32, #tpu.memory_space<vmem>>, %arg11: memref<32x512xf32, #tpu.memory_space<vmem>>, %arg12: memref<72x512xf32, #tpu.memory_space<vmem>>) attributes {dimension_semantics = [#tpu.dimension_semantics<parallel>], iteration_bounds = array<i64: 2>, scalar_prefetch = 0 : i64, scratch_operands = 1 : i64, tpu.core_type = #tpu.core_type<tc>, window_params = [{transform_indices = @transform_0, window_bounds = array<i64: 32, 512>}, {pipeline_mode = #tpu.pipeline_mode<synchronous>, transform_indices = @transform_1, window_bounds = array<i64: 9, 512>}, {pipeline_mode = #tpu.pipeline_mode<synchronous>, transform_indices = @transform_2, window_bounds = array<i64: 8, 32>}, {pipeline_mode = #tpu.pipeline_mode<synchronous>, transform_indices = @transform_3, window_bounds = array<i64: 8, 1>}, {pipeline_mode = #tpu.pipeline_mode<synchronous>, transform_indices = @transform_4, window_bounds = array<i64: 8, 72>}, {pipeline_mode = #tpu.pipeline_mode<synchronous>, transform_indices = @transform_5, window_bounds = array<i64: 8, 1>}, {pipeline_mode = #tpu.pipeline_mode<synchronous>, transform_indices = @transform_6, window_bounds = array<i64: 8, 72>}, {pipeline_mode = #tpu.pipeline_mode<synchronous>, transform_indices = @transform_7, window_bounds = array<i64: 8, 1>}, {pipeline_mode = #tpu.pipeline_mode<synchronous>, transform_indices = @transform_8, window_bounds = array<i64: 1, 8>}, {pipeline_mode = #tpu.pipeline_mode<synchronous>, transform_indices = @transform_9, window_bounds = array<i64: 1, 1>}, {transform_indices = @transform_10, window_bounds = array<i64: 32, 512>}]} {
    %c0 = arith.constant 0 : index
    %c0_0 = arith.constant 0 : index
    %0 = vector.load %arg1[%c0, %c0_0] : memref<32x512xf32, #tpu.memory_space<vmem>>, vector<32x512xf32>
    %c0_1 = arith.constant 0 : index
    %c0_2 = arith.constant 0 : index
    %1 = vector.load %arg2[%c0_1, %c0_2] : memref<9x512xf32, #tpu.memory_space<vmem>>, vector<9x512xf32>
    %c0_3 = arith.constant 0 : index
    %c0_4 = arith.constant 0 : index
    %2 = vector.load %arg3[%c0_3, %c0_4] : memref<8x32xf32, #tpu.memory_space<vmem>>, vector<8x32xf32>
    %cst = arith.constant dense<0.000000e+00> : vector<8x512xf32>
    %3 = tpu.matmul %2, %0, %cst {dimension_numbers = #tpu.dot_dimension_numbers<[1], [0], [0], [1], [0, 0, 1, 1], [], []>} : vector<8x32xf32>, vector<32x512xf32>, vector<8x512xf32> -> vector<8x512xf32>
    %c0_5 = arith.constant 0 : index
    %c0_6 = arith.constant 0 : index
    %4 = vector.load %arg4[%c0_5, %c0_6] : memref<8x1xf32, #tpu.memory_space<vmem>>, vector<8x1xf32>
    %5 = vector.broadcast %4 : vector<8x1xf32> to vector<8x512xf32>
    %6 = arith.addf %3, %5 : vector<8x512xf32>
    %cst_7 = arith.constant 0.000000e+00 : f32
    %7 = vector.broadcast %cst_7 : f32 to vector<8x512xf32>
    %8 = arith.maximumf %6, %7 : vector<8x512xf32>
    %c68_i32 = arith.constant 68 : i32
    %9 = tpu.dynamic_rotate %8 by %c68_i32 dim 1 : vector<8x512xf32>, i32 -> vector<8x512xf32>
    %10 = vector.extract_strided_slice %1 {offsets = [0, 0], sizes = [1, 512], strides = [1, 1]} : vector<9x512xf32> to vector<1x512xf32>
    %11 = vector.broadcast %10 : vector<1x512xf32> to vector<8x512xf32>
    %12 = arith.mulf %9, %11 : vector<8x512xf32>
    %c0_8 = arith.constant 0 : index
    %c0_9 = arith.constant 0 : index
    %13 = vector.load %arg12[%c0_8, %c0_9] : memref<72x512xf32, #tpu.memory_space<vmem>>, vector<8x512xf32>
    tpu.vector_store %arg12[%c0_8, %c0_9], %12 {strides = array<i32>} : memref<72x512xf32, #tpu.memory_space<vmem>>, vector<8x512xf32>,
    %c64_i32 = arith.constant 64 : i32
    %14 = tpu.dynamic_rotate %8 by %c64_i32 dim 1 : vector<8x512xf32>, i32 -> vector<8x512xf32>
    %15 = vector.extract_strided_slice %1 {offsets = [1, 0], sizes = [1, 512], strides = [1, 1]} : vector<9x512xf32> to vector<1x512xf32>
    %16 = vector.broadcast %15 : vector<1x512xf32> to vector<8x512xf32>
    %17 = arith.mulf %14, %16 : vector<8x512xf32>
    %c8 = arith.constant 8 : index
    %c0_10 = arith.constant 0 : index
    %18 = vector.load %arg12[%c8, %c0_10] : memref<72x512xf32, #tpu.memory_space<vmem>>, vector<8x512xf32>
    tpu.vector_store %arg12[%c8, %c0_10], %17 {strides = array<i32>} : memref<72x512xf32, #tpu.memory_space<vmem>>, vector<8x512xf32>,
    %c60_i32 = arith.constant 60 : i32
    %19 = tpu.dynamic_rotate %8 by %c60_i32 dim 1 : vector<8x512xf32>, i32 -> vector<8x512xf32>
    %20 = vector.extract_strided_slice %1 {offsets = [2, 0], sizes = [1, 512], strides = [1, 1]} : vector<9x512xf32> to vector<1x512xf32>
    %21 = vector.broadcast %20 : vector<1x512xf32> to vector<8x512xf32>
    %22 = arith.mulf %19, %21 : vector<8x512xf32>
    %c16 = arith.constant 16 : index
    %c0_11 = arith.constant 0 : index
    %23 = vector.load %arg12[%c16, %c0_11] : memref<72x512xf32, #tpu.memory_space<vmem>>, vector<8x512xf32>
    tpu.vector_store %arg12[%c16, %c0_11], %22 {strides = array<i32>} : memref<72x512xf32, #tpu.memory_space<vmem>>, vector<8x512xf32>,
    %c4_i32 = arith.constant 4 : i32
    %24 = tpu.dynamic_rotate %8 by %c4_i32 dim 1 : vector<8x512xf32>, i32 -> vector<8x512xf32>
    %25 = vector.extract_strided_slice %1 {offsets = [3, 0], sizes = [1, 512], strides = [1, 1]} : vector<9x512xf32> to vector<1x512xf32>
    %26 = vector.broadcast %25 : vector<1x512xf32> to vector<8x512xf32>
    %27 = arith.mulf %24, %26 : vector<8x512xf32>
    %c24 = arith.constant 24 : index
    %c0_12 = arith.constant 0 : index
    %28 = vector.load %arg12[%c24, %c0_12] : memref<72x512xf32, #tpu.memory_space<vmem>>, vector<8x512xf32>
    tpu.vector_store %arg12[%c24, %c0_12], %27 {strides = array<i32>} : memref<72x512xf32, #tpu.memory_space<vmem>>, vector<8x512xf32>,
    %c32 = arith.constant 32 : index
    %c0_13 = arith.constant 0 : index
    %29 = vector.load %arg12[%c32, %c0_13] : memref<72x512xf32, #tpu.memory_space<vmem>>, vector<8x512xf32>
    tpu.vector_store %arg12[%c32, %c0_13], %8 {strides = array<i32>} : memref<72x512xf32, #tpu.memory_space<vmem>>, vector<8x512xf32>,
    %c508_i32 = arith.constant 508 : i32
    %30 = tpu.dynamic_rotate %8 by %c508_i32 dim 1 : vector<8x512xf32>, i32 -> vector<8x512xf32>
    %31 = vector.extract_strided_slice %1 {offsets = [5, 0], sizes = [1, 512], strides = [1, 1]} : vector<9x512xf32> to vector<1x512xf32>
    %32 = vector.broadcast %31 : vector<1x512xf32> to vector<8x512xf32>
    %33 = arith.mulf %30, %32 : vector<8x512xf32>
    %c40 = arith.constant 40 : index
    %c0_14 = arith.constant 0 : index
    %34 = vector.load %arg12[%c40, %c0_14] : memref<72x512xf32, #tpu.memory_space<vmem>>, vector<8x512xf32>
    tpu.vector_store %arg12[%c40, %c0_14], %33 {strides = array<i32>} : memref<72x512xf32, #tpu.memory_space<vmem>>, vector<8x512xf32>,
    %c452_i32 = arith.constant 452 : i32
    %35 = tpu.dynamic_rotate %8 by %c452_i32 dim 1 : vector<8x512xf32>, i32 -> vector<8x512xf32>
    %36 = vector.extract_strided_slice %1 {offsets = [6, 0], sizes = [1, 512], strides = [1, 1]} : vector<9x512xf32> to vector<1x512xf32>
    %37 = vector.broadcast %36 : vector<1x512xf32> to vector<8x512xf32>
    %38 = arith.mulf %35, %37 : vector<8x512xf32>
    %c48 = arith.constant 48 : index
    %c0_15 = arith.constant 0 : index
    %39 = vector.load %arg12[%c48, %c0_15] : memref<72x512xf32, #tpu.memory_space<vmem>>, vector<8x512xf32>
    tpu.vector_store %arg12[%c48, %c0_15], %38 {strides = array<i32>} : memref<72x512xf32, #tpu.memory_space<vmem>>, vector<8x512xf32>,
    %c448_i32 = arith.constant 448 : i32
    %40 = tpu.dynamic_rotate %8 by %c448_i32 dim 1 : vector<8x512xf32>, i32 -> vector<8x512xf32>
    %41 = vector.extract_strided_slice %1 {offsets = [7, 0], sizes = [1, 512], strides = [1, 1]} : vector<9x512xf32> to vector<1x512xf32>
    %42 = vector.broadcast %41 : vector<1x512xf32> to vector<8x512xf32>
    %43 = arith.mulf %40, %42 : vector<8x512xf32>
    %c56 = arith.constant 56 : index
    %c0_16 = arith.constant 0 : index
    %44 = vector.load %arg12[%c56, %c0_16] : memref<72x512xf32, #tpu.memory_space<vmem>>, vector<8x512xf32>
    tpu.vector_store %arg12[%c56, %c0_16], %43 {strides = array<i32>} : memref<72x512xf32, #tpu.memory_space<vmem>>, vector<8x512xf32>,
    %c444_i32 = arith.constant 444 : i32
    %45 = tpu.dynamic_rotate %8 by %c444_i32 dim 1 : vector<8x512xf32>, i32 -> vector<8x512xf32>
    %46 = vector.extract_strided_slice %1 {offsets = [8, 0], sizes = [1, 512], strides = [1, 1]} : vector<9x512xf32> to vector<1x512xf32>
    %47 = vector.broadcast %46 : vector<1x512xf32> to vector<8x512xf32>
    %48 = arith.mulf %45, %47 : vector<8x512xf32>
    %c64 = arith.constant 64 : index
    %c0_17 = arith.constant 0 : index
    %49 = vector.load %arg12[%c64, %c0_17] : memref<72x512xf32, #tpu.memory_space<vmem>>, vector<8x512xf32>
    tpu.vector_store %arg12[%c64, %c0_17], %48 {strides = array<i32>} : memref<72x512xf32, #tpu.memory_space<vmem>>, vector<8x512xf32>,
    %c0_18 = arith.constant 0 : index
    %c0_19 = arith.constant 0 : index
    %50 = vector.load %arg5[%c0_18, %c0_19] : memref<8x72xf32, #tpu.memory_space<vmem>>, vector<8x72xf32>
    %c0_20 = arith.constant 0 : index
    %c0_21 = arith.constant 0 : index
    %51 = vector.load %arg12[%c0_20, %c0_21] : memref<72x512xf32, #tpu.memory_space<vmem>>, vector<72x512xf32>
    %cst_22 = arith.constant dense<0.000000e+00> : vector<8x512xf32>
    %52 = tpu.matmul %50, %51, %cst_22 {dimension_numbers = #tpu.dot_dimension_numbers<[1], [0], [0], [1], [0, 0, 1, 1], [], []>} : vector<8x72xf32>, vector<72x512xf32>, vector<8x512xf32> -> vector<8x512xf32>
    %c0_23 = arith.constant 0 : index
    %c0_24 = arith.constant 0 : index
    %53 = vector.load %arg6[%c0_23, %c0_24] : memref<8x1xf32, #tpu.memory_space<vmem>>, vector<8x1xf32>
    %54 = vector.broadcast %53 : vector<8x1xf32> to vector<8x512xf32>
    %55 = arith.addf %52, %54 : vector<8x512xf32>
    %cst_25 = arith.constant 0.000000e+00 : f32
    %56 = vector.broadcast %cst_25 : f32 to vector<8x512xf32>
    %57 = arith.maximumf %55, %56 : vector<8x512xf32>
    %c68_i32_26 = arith.constant 68 : i32
    %58 = tpu.dynamic_rotate %57 by %c68_i32_26 dim 1 : vector<8x512xf32>, i32 -> vector<8x512xf32>
    %59 = vector.extract_strided_slice %1 {offsets = [0, 0], sizes = [1, 512], strides = [1, 1]} : vector<9x512xf32> to vector<1x512xf32>
    %60 = vector.broadcast %59 : vector<1x512xf32> to vector<8x512xf32>
    %61 = arith.mulf %58, %60 : vector<8x512xf32>
    %c0_27 = arith.constant 0 : index
    %c0_28 = arith.constant 0 : index
    %62 = vector.load %arg12[%c0_27, %c0_28] : memref<72x512xf32, #tpu.memory_space<vmem>>, vector<8x512xf32>
    tpu.vector_store %arg12[%c0_27, %c0_28], %61 {strides = array<i32>} : memref<72x512xf32, #tpu.memory_space<vmem>>, vector<8x512xf32>,
    %c64_i32_29 = arith.constant 64 : i32
    %63 = tpu.dynamic_rotate %57 by %c64_i32_29 dim 1 : vector<8x512xf32>, i32 -> vector<8x512xf32>
    %64 = vector.extract_strided_slice %1 {offsets = [1, 0], sizes = [1, 512], strides = [1, 1]} : vector<9x512xf32> to vector<1x512xf32>
    %65 = vector.broadcast %64 : vector<1x512xf32> to vector<8x512xf32>
    %66 = arith.mulf %63, %65 : vector<8x512xf32>
    %c8_30 = arith.constant 8 : index
    %c0_31 = arith.constant 0 : index
    %67 = vector.load %arg12[%c8_30, %c0_31] : memref<72x512xf32, #tpu.memory_space<vmem>>, vector<8x512xf32>
    tpu.vector_store %arg12[%c8_30, %c0_31], %66 {strides = array<i32>} : memref<72x512xf32, #tpu.memory_space<vmem>>, vector<8x512xf32>,
    %c60_i32_32 = arith.constant 60 : i32
    %68 = tpu.dynamic_rotate %57 by %c60_i32_32 dim 1 : vector<8x512xf32>, i32 -> vector<8x512xf32>
    %69 = vector.extract_strided_slice %1 {offsets = [2, 0], sizes = [1, 512], strides = [1, 1]} : vector<9x512xf32> to vector<1x512xf32>
    %70 = vector.broadcast %69 : vector<1x512xf32> to vector<8x512xf32>
    %71 = arith.mulf %68, %70 : vector<8x512xf32>
    %c16_33 = arith.constant 16 : index
    %c0_34 = arith.constant 0 : index
    %72 = vector.load %arg12[%c16_33, %c0_34] : memref<72x512xf32, #tpu.memory_space<vmem>>, vector<8x512xf32>
    tpu.vector_store %arg12[%c16_33, %c0_34], %71 {strides = array<i32>} : memref<72x512xf32, #tpu.memory_space<vmem>>, vector<8x512xf32>,
    %c4_i32_35 = arith.constant 4 : i32
    %73 = tpu.dynamic_rotate %57 by %c4_i32_35 dim 1 : vector<8x512xf32>, i32 -> vector<8x512xf32>
    %74 = vector.extract_strided_slice %1 {offsets = [3, 0], sizes = [1, 512], strides = [1, 1]} : vector<9x512xf32> to vector<1x512xf32>
    %75 = vector.broadcast %74 : vector<1x512xf32> to vector<8x512xf32>
    %76 = arith.mulf %73, %75 : vector<8x512xf32>
    %c24_36 = arith.constant 24 : index
    %c0_37 = arith.constant 0 : index
    %77 = vector.load %arg12[%c24_36, %c0_37] : memref<72x512xf32, #tpu.memory_space<vmem>>, vector<8x512xf32>
    tpu.vector_store %arg12[%c24_36, %c0_37], %76 {strides = array<i32>} : memref<72x512xf32, #tpu.memory_space<vmem>>, vector<8x512xf32>,
    %c32_38 = arith.constant 32 : index
    %c0_39 = arith.constant 0 : index
    %78 = vector.load %arg12[%c32_38, %c0_39] : memref<72x512xf32, #tpu.memory_space<vmem>>, vector<8x512xf32>
    tpu.vector_store %arg12[%c32_38, %c0_39], %57 {strides = array<i32>} : memref<72x512xf32, #tpu.memory_space<vmem>>, vector<8x512xf32>,
    %c508_i32_40 = arith.constant 508 : i32
    %79 = tpu.dynamic_rotate %57 by %c508_i32_40 dim 1 : vector<8x512xf32>, i32 -> vector<8x512xf32>
    %80 = vector.extract_strided_slice %1 {offsets = [5, 0], sizes = [1, 512], strides = [1, 1]} : vector<9x512xf32> to vector<1x512xf32>
    %81 = vector.broadcast %80 : vector<1x512xf32> to vector<8x512xf32>
    %82 = arith.mulf %79, %81 : vector<8x512xf32>
    %c40_41 = arith.constant 40 : index
    %c0_42 = arith.constant 0 : index
    %83 = vector.load %arg12[%c40_41, %c0_42] : memref<72x512xf32, #tpu.memory_space<vmem>>, vector<8x512xf32>
    tpu.vector_store %arg12[%c40_41, %c0_42], %82 {strides = array<i32>} : memref<72x512xf32, #tpu.memory_space<vmem>>, vector<8x512xf32>,
    %c452_i32_43 = arith.constant 452 : i32
    %84 = tpu.dynamic_rotate %57 by %c452_i32_43 dim 1 : vector<8x512xf32>, i32 -> vector<8x512xf32>
    %85 = vector.extract_strided_slice %1 {offsets = [6, 0], sizes = [1, 512], strides = [1, 1]} : vector<9x512xf32> to vector<1x512xf32>
    %86 = vector.broadcast %85 : vector<1x512xf32> to vector<8x512xf32>
    %87 = arith.mulf %84, %86 : vector<8x512xf32>
    %c48_44 = arith.constant 48 : index
    %c0_45 = arith.constant 0 : index
    %88 = vector.load %arg12[%c48_44, %c0_45] : memref<72x512xf32, #tpu.memory_space<vmem>>, vector<8x512xf32>
    tpu.vector_store %arg12[%c48_44, %c0_45], %87 {strides = array<i32>} : memref<72x512xf32, #tpu.memory_space<vmem>>, vector<8x512xf32>,
    %c448_i32_46 = arith.constant 448 : i32
    %89 = tpu.dynamic_rotate %57 by %c448_i32_46 dim 1 : vector<8x512xf32>, i32 -> vector<8x512xf32>
    %90 = vector.extract_strided_slice %1 {offsets = [7, 0], sizes = [1, 512], strides = [1, 1]} : vector<9x512xf32> to vector<1x512xf32>
    %91 = vector.broadcast %90 : vector<1x512xf32> to vector<8x512xf32>
    %92 = arith.mulf %89, %91 : vector<8x512xf32>
    %c56_47 = arith.constant 56 : index
    %c0_48 = arith.constant 0 : index
    %93 = vector.load %arg12[%c56_47, %c0_48] : memref<72x512xf32, #tpu.memory_space<vmem>>, vector<8x512xf32>
    tpu.vector_store %arg12[%c56_47, %c0_48], %92 {strides = array<i32>} : memref<72x512xf32, #tpu.memory_space<vmem>>, vector<8x512xf32>,
    %c444_i32_49 = arith.constant 444 : i32
    %94 = tpu.dynamic_rotate %57 by %c444_i32_49 dim 1 : vector<8x512xf32>, i32 -> vector<8x512xf32>
    %95 = vector.extract_strided_slice %1 {offsets = [8, 0], sizes = [1, 512], strides = [1, 1]} : vector<9x512xf32> to vector<1x512xf32>
    %96 = vector.broadcast %95 : vector<1x512xf32> to vector<8x512xf32>
    %97 = arith.mulf %94, %96 : vector<8x512xf32>
    %c64_50 = arith.constant 64 : index
    %c0_51 = arith.constant 0 : index
    %98 = vector.load %arg12[%c64_50, %c0_51] : memref<72x512xf32, #tpu.memory_space<vmem>>, vector<8x512xf32>
    tpu.vector_store %arg12[%c64_50, %c0_51], %97 {strides = array<i32>} : memref<72x512xf32, #tpu.memory_space<vmem>>, vector<8x512xf32>,
    %c0_52 = arith.constant 0 : index
    %c0_53 = arith.constant 0 : index
    %99 = vector.load %arg7[%c0_52, %c0_53] : memref<8x72xf32, #tpu.memory_space<vmem>>, vector<8x72xf32>
    %c0_54 = arith.constant 0 : index
    %c0_55 = arith.constant 0 : index
    %100 = vector.load %arg12[%c0_54, %c0_55] : memref<72x512xf32, #tpu.memory_space<vmem>>, vector<72x512xf32>
    %cst_56 = arith.constant dense<0.000000e+00> : vector<8x512xf32>
    %101 = tpu.matmul %99, %100, %cst_56 {dimension_numbers = #tpu.dot_dimension_numbers<[1], [0], [0], [1], [0, 0, 1, 1], [], []>} : vector<8x72xf32>, vector<72x512xf32>, vector<8x512xf32> -> vector<8x512xf32>
    %c0_57 = arith.constant 0 : index
    %c0_58 = arith.constant 0 : index
    %102 = vector.load %arg8[%c0_57, %c0_58] : memref<8x1xf32, #tpu.memory_space<vmem>>, vector<8x1xf32>
    %103 = vector.broadcast %102 : vector<8x1xf32> to vector<8x512xf32>
    %104 = arith.addf %101, %103 : vector<8x512xf32>
    %cst_59 = arith.constant 0.000000e+00 : f32
    %105 = vector.broadcast %cst_59 : f32 to vector<8x512xf32>
    %106 = arith.maximumf %104, %105 : vector<8x512xf32>
    %c0_60 = arith.constant 0 : index
    %c0_61 = arith.constant 0 : index
    %107 = vector.load %arg9[%c0_60, %c0_61] : memref<1x8xf32, #tpu.memory_space<vmem>>, vector<1x8xf32>
    %cst_62 = arith.constant dense<0.000000e+00> : vector<1x512xf32>
    %108 = tpu.matmul %107, %106, %cst_62 {dimension_numbers = #tpu.dot_dimension_numbers<[1], [0], [0], [1], [0, 0, 1, 1], [], []>} : vector<1x8xf32>, vector<8x512xf32>, vector<1x512xf32> -> vector<1x512xf32>
    %c0_63 = arith.constant 0 : index
    %c0_64 = arith.constant 0 : index
    %109 = vector.load %arg10[%c0_63, %c0_64] : memref<1x1xf32, #tpu.memory_space<vmem>>, vector<1x1xf32>
    %110 = vector.broadcast %109 : vector<1x1xf32> to vector<1x512xf32>
    %111 = arith.addf %108, %110 : vector<1x512xf32>
    %cst_65 = arith.constant 0.000000e+00 : f32
    %112 = vector.broadcast %cst_65 : f32 to vector<1x512xf32>
    %113 = arith.subf %112, %111 : vector<1x512xf32>
    %114 = math.exp %113 : vector<1x512xf32>
    %cst_66 = arith.constant 1.000000e+00 : f32
    %115 = vector.broadcast %cst_66 : f32 to vector<1x512xf32>
    %116 = arith.addf %115, %114 : vector<1x512xf32>
    %117 = tpu.reciprocal %116 {approx = true} : vector<1x512xf32> -> vector<1x512xf32>
    %cst_67 = arith.constant 1.000000e+00 : f32
    %118 = vector.broadcast %cst_67 : f32 to vector<1x512xf32>
    %119 = arith.addf %118, %117 : vector<1x512xf32>
    %120 = vector.broadcast %119 : vector<1x512xf32> to vector<32x512xf32>
    %121 = arith.mulf %0, %120 : vector<32x512xf32>
    %c0_68 = arith.constant 0 : index
    %c0_69 = arith.constant 0 : index
    %122 = vector.load %arg11[%c0_68, %c0_69] : memref<32x512xf32, #tpu.memory_space<vmem>>, vector<32x512xf32>
    tpu.vector_store %arg11[%c0_68, %c0_69], %121 {strides = array<i32>} : memref<32x512xf32, #tpu.memory_space<vmem>>, vector<32x512xf32>,
    return
  }
  func.func @transform_0(%arg0: i32) -> (i32, i32) {
    %c0_i32 = arith.constant 0 : i32
    %c0_i32_0 = arith.constant 0 : i32
    return %c0_i32, %arg0 : i32, i32
  }
  func.func @transform_1(%arg0: i32) -> (i32, i32) {
    %c0_i32 = arith.constant 0 : i32
    %c0_i32_0 = arith.constant 0 : i32
    %c0_i32_1 = arith.constant 0 : i32
    return %c0_i32, %c0_i32_0 : i32, i32
  }
  func.func @transform_2(%arg0: i32) -> (i32, i32) {
    %c0_i32 = arith.constant 0 : i32
    %c0_i32_0 = arith.constant 0 : i32
    %c0_i32_1 = arith.constant 0 : i32
    return %c0_i32, %c0_i32_0 : i32, i32
  }
  func.func @transform_3(%arg0: i32) -> (i32, i32) {
    %c0_i32 = arith.constant 0 : i32
    %c0_i32_0 = arith.constant 0 : i32
    %c0_i32_1 = arith.constant 0 : i32
    return %c0_i32, %c0_i32_0 : i32, i32
  }
  func.func @transform_4(%arg0: i32) -> (i32, i32) {
    %c0_i32 = arith.constant 0 : i32
    %c0_i32_0 = arith.constant 0 : i32
    %c0_i32_1 = arith.constant 0 : i32
    return %c0_i32, %c0_i32_0 : i32, i32
  }
  func.func @transform_5(%arg0: i32) -> (i32, i32) {
    %c0_i32 = arith.constant 0 : i32
    %c0_i32_0 = arith.constant 0 : i32
    %c0_i32_1 = arith.constant 0 : i32
    return %c0_i32, %c0_i32_0 : i32, i32
  }
  func.func @transform_6(%arg0: i32) -> (i32, i32) {
    %c0_i32 = arith.constant 0 : i32
    %c0_i32_0 = arith.constant 0 : i32
    %c0_i32_1 = arith.constant 0 : i32
    return %c0_i32, %c0_i32_0 : i32, i32
  }
  func.func @transform_7(%arg0: i32) -> (i32, i32) {
    %c0_i32 = arith.constant 0 : i32
    %c0_i32_0 = arith.constant 0 : i32
    %c0_i32_1 = arith.constant 0 : i32
    return %c0_i32, %c0_i32_0 : i32, i32
  }
  func.func @transform_8(%arg0: i32) -> (i32, i32) {
    %c0_i32 = arith.constant 0 : i32
    %c0_i32_0 = arith.constant 0 : i32
    %c0_i32_1 = arith.constant 0 : i32
    return %c0_i32, %c0_i32_0 : i32, i32
  }
  func.func @transform_9(%arg0: i32) -> (i32, i32) {
    %c0_i32 = arith.constant 0 : i32
    %c0_i32_0 = arith.constant 0 : i32
    %c0_i32_1 = arith.constant 0 : i32
    return %c0_i32, %c0_i32_0 : i32, i32
  }
  func.func @transform_10(%arg0: i32) -> (i32, i32) {
    %c0_i32 = arith.constant 0 : i32
    %c0_i32_0 = arith.constant 0 : i32
    return %c0_i32, %arg0 : i32, i32
  }
}

</mosaic_0001>

<llo_original>
// kernel: spatial_gate_forward.1
$region0: #{spatial_gate_forward.1}
  #allocation0 [shape = 'u32[]', space=smem, size = 0x4, offset = 0x4, fixed_abs, tag = 'smem constant byte address 0x4 - core index']
  #allocation1 [shape = 'u32[144,128]{1,0:T(1,128)}', space=vmem, size = 0x12000, scoped, tag = 'internal scratch']
  #allocation2 [shape = 'f32[72,512]{1,0:T(8,128)}', space=vmem, size = 0x24000, scoped, tag = 'scratch operand']
  #allocation3 [shape = 'f32[1,1]{1,0:T(1,128)S(1)}', space=vmem, size = 0x200, scoped, tag = 'scoped memory for spatial_gate_forward.1']
  %s0 = inlined_call_operand.vmem [shape: f32[32,1024], index: 0, kind: input, shape index: {}]
  %s1 = inlined_call_operand.vmem [shape: f32[9,512], index: 1, kind: input, shape index: {}]
  %s2 = inlined_call_operand.vmem [shape: f32[8,32], index: 2, kind: input, shape index: {}]
  %s3 = inlined_call_operand.vmem [shape: f32[8,1], index: 3, kind: input, shape index: {}]
  %s4 = inlined_call_operand.vmem [shape: f32[8,72], index: 4, kind: input, shape index: {}]
  %s5 = inlined_call_operand.vmem [shape: f32[8,1], index: 5, kind: input, shape index: {}]
  %s6 = inlined_call_operand.vmem [shape: f32[8,72], index: 6, kind: input, shape index: {}]
  %s7 = inlined_call_operand.vmem [shape: f32[8,1], index: 7, kind: input, shape index: {}]
  %s8 = inlined_call_operand.vmem [shape: f32[1,8], index: 8, kind: input, shape index: {}]
  %s9 = inlined_call_operand.<no memory space> [shape: f32[1,1], index: 9, kind: input, shape index: {}]
  %s10 = inlined_call_operand.vmem [shape: f32[32,1024], index: 10, kind: output, shape index: {}]
  %s11 = sld [smem:[#allocation0]]
  $region115: #{spatial_gate_forward.1} parent=0
    _
  %s13 = ssub.s32 1, %s11
  %s14 = scalar_select 0, %s13, %s11
  %v15 = vstv %s9
  %16 = vst [vmem:[#allocation3] sm:$0x1] %v15
  $region1: #{spatial_gate_forward.1} parent=0
    #allocation4 [shape = 'u8[131072]{0}', space=vmem, size = 0x20000, scoped, tag = 'input window, operand 0']
    #allocation5 [shape = 'u8[131072]{0}', space=vmem, size = 0x20000, scoped, tag = 'output window, operand 0']
    loop: start=0, step=1, limit=4
    $region2: #{spatial_gate_forward.1} parent=1 // loop_pre_header
      _
    $region3: #{spatial_gate_forward.1} parent=1 // loop_header
      %s18 = sphi 0, %s22
      %p19 = scmp.ge.s32.totalorder %s18, 4
      %s28 = sphi 0, %s30
      %s31 = sphi 0, %s28
      %s32 = sphi 0, %s31
      %s48 = sphi 0, %s32
      %s52 = sphi 0, %s52
      %s54 = sphi 0, %s52
      %s55 = sphi 0, %s54
      %s69 = sphi 0, %s55
      %s73 = sphi 0, %s73
      %s75 = sphi 0, %s73
      %s76 = sphi 0, %s75
      %s90 = sphi 0, %s76
      %s94 = sphi 0, %s94
      %s96 = sphi 0, %s94
      %s97 = sphi 0, %s96
      %s111 = sphi 0, %s97
      %s115 = sphi 0, %s115
      %s117 = sphi 0, %s115
      %s118 = sphi 0, %s117
      %s132 = sphi 0, %s118
      %s136 = sphi 0, %s136
      %s138 = sphi 0, %s136
      %s139 = sphi 0, %s138
      %s153 = sphi 0, %s139
      %s157 = sphi 0, %s157
      %s159 = sphi 0, %s157
      %s160 = sphi 0, %s159
      %s174 = sphi 0, %s160
      %s178 = sphi 0, %s178
      %s180 = sphi 0, %s178
      %s181 = sphi 0, %s180
      %s195 = sphi 0, %s181
      %s199 = sphi 0, %s199
      %s201 = sphi 0, %s199
      %s202 = sphi 0, %s201
      %s216 = sphi 0, %s202
      %s220 = sphi 0, %s220
      %s222 = sphi 0, %s220
      %s223 = sphi 0, %s222
      %s237 = sphi 0, %s223
      %s243 = sphi 0, %s245
      %s246 = sphi 0, %s243
      %s247 = sphi 0, %s246
      %s263 = sphi 0, %s247
    $region4: #{spatial_gate_forward.1} parent=1 // loop_header_branch
      %21 = sbr.rel (%p19) target = $region8
    $region5: #{spatial_gate_forward.1} parent=1 // loop_body
      %s23 = ssub.s32 %s18, 1
      %s24 = ssub.s32 %s18, 2
      %s25 = sadd.s32 %s18, 1
      %s26 = ssub.s32 %s18, %s25
      %p27 = scmp.eq.s32.totalorder %s26, 0
      %s29 = sadd.s32 %s28, 1
      %s30 = scalar_select %p27, %s28, %s29
      %p33 = pneg %p27
      %p34 = scmp.eq.s32.totalorder %s18, 1
      %p35 = por %p33, %p34
      %p36 = scmp.ne.s32.totalorder %s28, %s31
      %p37 = scmp.eq.s32.totalorder %s18, 0
      %p38 = por %p36, %p37
      %p39 = scmp.ne.s32.totalorder %s28, %s31
      %p40 = scmp.eq.s32.totalorder %s23, 1
      %p41 = por %p39, %p40
      %p42 = scmp.ne.s32.totalorder %s31, %s32
      %p43 = scmp.eq.s32.totalorder %s23, 0
      %p44 = por %p42, %p43
      %p45 = scmp.ne.s32.totalorder %s31, %s32
      %p46 = scmp.eq.s32.totalorder %s24, 1
      %p47 = por %p45, %p46
      %p49 = scmp.ne.s32.totalorder %s32, %s48
      %p50 = scmp.eq.s32.totalorder %s24, 0
      %p51 = por %p49, %p50
      %s53 = sadd.s32 %s52, 1
      %p56 = scmp.eq.s32.totalorder %s18, 1
      %p57 = scmp.ne.s32.totalorder %s52, %s54
      %p58 = scmp.eq.s32.totalorder %s18, 0
      %p59 = por %p57, %p58
      %p60 = scmp.ne.s32.totalorder %s52, %s54
      %p61 = scmp.eq.s32.totalorder %s23, 1
      %p62 = por %p60, %p61
      %p63 = scmp.ne.s32.totalorder %s54, %s55
      %p64 = scmp.eq.s32.totalorder %s23, 0
      %p65 = por %p63, %p64
      %p66 = scmp.ne.s32.totalorder %s54, %s55
      %p67 = scmp.eq.s32.totalorder %s24, 1
      %p68 = por %p66, %p67
      %p70 = scmp.ne.s32.totalorder %s55, %s69
      %p71 = scmp.eq.s32.totalorder %s24, 0
      %p72 = por %p70, %p71
      %s74 = sadd.s32 %s73, 1
      %p77 = scmp.eq.s32.totalorder %s18, 1
      %p78 = scmp.ne.s32.totalorder %s73, %s75
      %p79 = scmp.eq.s32.totalorder %s18, 0
      %p80 = por %p78, %p79
      %p81 = scmp.ne.s32.totalorder %s73, %s75
      %p82 = scmp.eq.s32.totalorder %s23, 1
      %p83 = por %p81, %p82
      %p84 = scmp.ne.s32.totalorder %s75, %s76
      %p85 = scmp.eq.s32.totalorder %s23, 0
      %p86 = por %p84, %p85
      %p87 = scmp.ne.s32.totalorder %s75, %s76
      %p88 = scmp.eq.s32.totalorder %s24, 1
      %p89 = por %p87, %p88
      %p91 = scmp.ne.s32.totalorder %s76, %s90
      %p92 = scmp.eq.s32.totalorder %s24, 0
      %p93 = por %p91, %p92
      %s95 = sadd.s32 %s94, 1
      %p98 = scmp.eq.s32.totalorder %s18, 1
      %p99 = scmp.ne.s32.totalorder %s94, %s96
      %p100 = scmp.eq.s32.totalorder %s18, 0
      %p101 = por %p99, %p100
      %p102 = scmp.ne.s32.totalorder %s94, %s96
      %p103 = scmp.eq.s32.totalorder %s23, 1
      %p104 = por %p102, %p103
      %p105 = scmp.ne.s32.totalorder %s96, %s97
      %p106 = scmp.eq.s32.totalorder %s23, 0
      %p107 = por %p105, %p106
      %p108 = scmp.ne.s32.totalorder %s96, %s97
      %p109 = scmp.eq.s32.totalorder %s24, 1
      %p110 = por %p108, %p109
      %p112 = scmp.ne.s32.totalorder %s97, %s111
      %p113 = scmp.eq.s32.totalorder %s24, 0
      %p114 = por %p112, %p113
      %s116 = sadd.s32 %s115, 1
      %p119 = scmp.eq.s32.totalorder %s18, 1
      %p120 = scmp.ne.s32.totalorder %s115, %s117
      %p121 = scmp.eq.s32.totalorder %s18, 0
      %p122 = por %p120, %p121
      %p123 = scmp.ne.s32.totalorder %s115, %s117
      %p124 = scmp.eq.s32.totalorder %s23, 1
      %p125 = por %p123, %p124
      %p126 = scmp.ne.s32.totalorder %s117, %s118
      %p127 = scmp.eq.s32.totalorder %s23, 0
      %p128 = por %p126, %p127
      %p129 = scmp.ne.s32.totalorder %s117, %s118
      %p130 = scmp.eq.s32.totalorder %s24, 1
      %p131 = por %p129, %p130
      %p133 = scmp.ne.s32.totalorder %s118, %s132
      %p134 = scmp.eq.s32.totalorder %s24, 0
      %p135 = por %p133, %p134
      %s137 = sadd.s32 %s136, 1
      %p140 = scmp.eq.s32.totalorder %s18, 1
      %p141 = scmp.ne.s32.totalorder %s136, %s138
      %p142 = scmp.eq.s32.totalorder %s18, 0
      %p143 = por %p141, %p142
      %p144 = scmp.ne.s32.totalorder %s136, %s138
      %p145 = scmp.eq.s32.totalorder %s23, 1
      %p146 = por %p144, %p145
      %p147 = scmp.ne.s32.totalorder %s138, %s139
      %p148 = scmp.eq.s32.totalorder %s23, 0
      %p149 = por %p147, %p148
      %p150 = scmp.ne.s32.totalorder %s138, %s139
      %p151 = scmp.eq.s32.totalorder %s24, 1
      %p152 = por %p150, %p151
      %p154 = scmp.ne.s32.totalorder %s139, %s153
      %p155 = scmp.eq.s32.totalorder %s24, 0
      %p156 = por %p154, %p155
      %s158 = sadd.s32 %s157, 1
      %p161 = scmp.eq.s32.totalorder %s18, 1
      %p162 = scmp.ne.s32.totalorder %s157, %s159
      %p163 = scmp.eq.s32.totalorder %s18, 0
      %p164 = por %p162, %p163
      %p165 = scmp.ne.s32.totalorder %s157, %s159
      %p166 = scmp.eq.s32.totalorder %s23, 1
      %p167 = por %p165, %p166
      %p168 = scmp.ne.s32.totalorder %s159, %s160
      %p169 = scmp.eq.s32.totalorder %s23, 0
      %p170 = por %p168, %p169
      %p171 = scmp.ne.s32.totalorder %s159, %s160
      %p172 = scmp.eq.s32.totalorder %s24, 1
      %p173 = por %p171, %p172
      %p175 = scmp.ne.s32.totalorder %s160, %s174
      %p176 = scmp.eq.s32.totalorder %s24, 0
      %p177 = por %p175, %p176
      %s179 = sadd.s32 %s178, 1
      %p182 = scmp.eq.s32.totalorder %s18, 1
      %p183 = scmp.ne.s32.totalorder %s178, %s180
      %p184 = scmp.eq.s32.totalorder %s18, 0
      %p185 = por %p183, %p184
      %p186 = scmp.ne.s32.totalorder %s178, %s180
      %p187 = scmp.eq.s32.totalorder %s23, 1
      %p188 = por %p186, %p187
      %p189 = scmp.ne.s32.totalorder %s180, %s181
      %p190 = scmp.eq.s32.totalorder %s23, 0
      %p191 = por %p189, %p190
      %p192 = scmp.ne.s32.totalorder %s180, %s181
      %p193 = scmp.eq.s32.totalorder %s24, 1
      %p194 = por %p192, %p193
      %p196 = scmp.ne.s32.totalorder %s181, %s195
      %p197 = scmp.eq.s32.totalorder %s24, 0
      %p198 = por %p196, %p197
      %s200 = sadd.s32 %s199, 1
      %p203 = scmp.eq.s32.totalorder %s18, 1
      %p204 = scmp.ne.s32.totalorder %s199, %s201
      %p205 = scmp.eq.s32.totalorder %s18, 0
      %p206 = por %p204, %p205
      %p207 = scmp.ne.s32.totalorder %s199, %s201
      %p208 = scmp.eq.s32.totalorder %s23, 1
      %p209 = por %p207, %p208
      %p210 = scmp.ne.s32.totalorder %s201, %s202
      %p211 = scmp.eq.s32.totalorder %s23, 0
      %p212 = por %p210, %p211
      %p213 = scmp.ne.s32.totalorder %s201, %s202
      %p214 = scmp.eq.s32.totalorder %s24, 1
      %p215 = por %p213, %p214
      %p217 = scmp.ne.s32.totalorder %s202, %s216
      %p218 = scmp.eq.s32.totalorder %s24, 0
      %p219 = por %p217, %p218
      %s221 = sadd.s32 %s220, 1
      %p224 = scmp.eq.s32.totalorder %s18, 1
      %p225 = scmp.ne.s32.totalorder %s220, %s222
      %p226 = scmp.eq.s32.totalorder %s18, 0
      %p227 = por %p225, %p226
      %p228 = scmp.ne.s32.totalorder %s220, %s222
      %p229 = scmp.eq.s32.totalorder %s23, 1
      %p230 = por %p228, %p229
      %p231 = scmp.ne.s32.totalorder %s222, %s223
      %p232 = scmp.eq.s32.totalorder %s23, 0
      %p233 = por %p231, %p232
      %p234 = scmp.ne.s32.totalorder %s222, %s223
      %p235 = scmp.eq.s32.totalorder %s24, 1
      %p236 = por %p234, %p235
      %p238 = scmp.ne.s32.totalorder %s223, %s237
      %p239 = scmp.eq.s32.totalorder %s24, 0
      %p240 = por %p238, %p239
      %s241 = ssub.s32 %s18, %s25
      %p242 = scmp.eq.s32.totalorder %s241, 0
      %s244 = sadd.s32 %s243, 1
      %s245 = scalar_select %p242, %s243, %s244
      %p248 = pneg %p242
      %p249 = scmp.eq.s32.totalorder %s18, 1
      %p250 = por %p248, %p249
      %p251 = scmp.ne.s32.totalorder %s243, %s246
      %p252 = scmp.eq.s32.totalorder %s18, 0
      %p253 = por %p251, %p252
      %p254 = scmp.ne.s32.totalorder %s243, %s246
      %p255 = scmp.eq.s32.totalorder %s23, 1
      %p256 = por %p254, %p255
      %p257 = scmp.ne.s32.totalorder %s246, %s247
      %p258 = scmp.eq.s32.totalorder %s23, 0
      %p259 = por %p257, %p258
      %p260 = scmp.ne.s32.totalorder %s246, %s247
      %p261 = scmp.eq.s32.totalorder %s24, 1
      %p262 = por %p260, %p261
      %p264 = scmp.ne.s32.totalorder %s247, %s263
      %p265 = scmp.eq.s32.totalorder %s24, 0
      %p266 = por %p264, %p265
      %p267 = scmp.le.s32.totalorder 1, %s18
      %p268 = scmp.lt.s32.totalorder %s18, 3
      %p269 = pnand %p267, %p268
      %p270 = pneg %p269
      // Predicated region
      $region9: #{spatial_gate_forward.1} parent=5 // pred_check
        _
      $region10: #{spatial_gate_forward.1} parent=5 // pred_check_branch
        %272 = sbr.rel (%p269) target = $region12
      $region11: #{spatial_gate_forward.1} parent=5 // pred_region
        %s273 = ssub.s32 %s18, 1
        // Predicated region
        $region13: #{spatial_gate_forward.1} parent=11 // pred_check
          %p274 = pneg %p65
        $region14: #{spatial_gate_forward.1} parent=11 // pred_check_branch
          %276 = sbr.rel (%p274) target = $region16
        $region15: #{spatial_gate_forward.1} parent=11 // pred_region
          _
        $region16: #{spatial_gate_forward.1} parent=11 // pred_fallthru
          _
        // Predicated region
        $region17: #{spatial_gate_forward.1} parent=11 // pred_check
          %p277 = pneg %p86
        $region18: #{spatial_gate_forward.1} parent=11 // pred_check_branch
          %279 = sbr.rel (%p277) target = $region20
        $region19: #{spatial_gate_forward.1} parent=11 // pred_region
          _
        $region20: #{spatial_gate_forward.1} parent=11 // pred_fallthru
          _
        // Predicated region
        $region21: #{spatial_gate_forward.1} parent=11 // pred_check
          %p280 = pneg %p107
        $region22: #{spatial_gate_forward.1} parent=11 // pred_check_branch
          %282 = sbr.rel (%p280) target = $region24
        $region23: #{spatial_gate_forward.1} parent=11 // pred_region
          _
        $region24: #{spatial_gate_forward.1} parent=11 // pred_fallthru
          _
        // Predicated region
        $region25: #{spatial_gate_forward.1} parent=11 // pred_check
          %p283 = pneg %p128
        $region26: #{spatial_gate_forward.1} parent=11 // pred_check_branch
          %285 = sbr.rel (%p283) target = $region28
        $region27: #{spatial_gate_forward.1} parent=11 // pred_region
          _
        $region28: #{spatial_gate_forward.1} parent=11 // pred_fallthru
          _
        // Predicated region
        $region29: #{spatial_gate_forward.1} parent=11 // pred_check
          %p286 = pneg %p149
        $region30: #{spatial_gate_forward.1} parent=11 // pred_check_branch
          %288 = sbr.rel (%p286) target = $region32
        $region31: #{spatial_gate_forward.1} parent=11 // pred_region
          _
        $region32: #{spatial_gate_forward.1} parent=11 // pred_fallthru
          _
        // Predicated region
        $region33: #{spatial_gate_forward.1} parent=11 // pred_check
          %p289 = pneg %p170
        $region34: #{spatial_gate_forward.1} parent=11 // pred_check_branch
          %291 = sbr.rel (%p289) target = $region36
        $region35: #{spatial_gate_forward.1} parent=11 // pred_region
          _
        $region36: #{spatial_gate_forward.1} parent=11 // pred_fallthru
          _
        // Predicated region
        $region37: #{spatial_gate_forward.1} parent=11 // pred_check
          %p292 = pneg %p191
        $region38: #{spatial_gate_forward.1} parent=11 // pred_check_branch
          %294 = sbr.rel (%p292) target = $region40
        $region39: #{spatial_gate_forward.1} parent=11 // pred_region
          _
        $region40: #{spatial_gate_forward.1} parent=11 // pred_fallthru
          _
        // Predicated region
        $region41: #{spatial_gate_forward.1} parent=11 // pred_check
          %p295 = pneg %p212
        $region42: #{spatial_gate_forward.1} parent=11 // pred_check_branch
          %297 = sbr.rel (%p295) target = $region44
        $region43: #{spatial_gate_forward.1} parent=11 // pred_region
          _
        $region44: #{spatial_gate_forward.1} parent=11 // pred_fallthru
          _
        // Predicated region
        $region45: #{spatial_gate_forward.1} parent=11 // pred_check
          %p298 = pneg %p233
        $region46: #{spatial_gate_forward.1} parent=11 // pred_check_branch
          %300 = sbr.rel (%p298) target = $region48
        $region47: #{spatial_gate_forward.1} parent=11 // pred_region
          _
        $region48: #{spatial_gate_forward.1} parent=11 // pred_fallthru
          _
      $region12: #{spatial_gate_forward.1} parent=5 // pred_fallthru
        _
      %p301 = scmp.lt.s32.totalorder %s18, 2
      // Predicated region
      $region49: #{spatial_gate_forward.1} parent=5 // pred_check
        %p302 = pneg %p301
      $region50: #{spatial_gate_forward.1} parent=5 // pred_check_branch
        %304 = sbr.rel (%p302) target = $region52
      $region51: #{spatial_gate_forward.1} parent=5 // pred_region
        // Predicated region
        $region53: #{spatial_gate_forward.1} parent=51 // pred_check
          %p305 = pneg %p38
        $region54: #{spatial_gate_forward.1} parent=51 // pred_check_branch
          %307 = sbr.rel (%p305) target = $region56
        $region55: #{spatial_gate_forward.1} parent=51 // pred_region
          %s308 = sand.u32 %s28, 1
          %s309 = sand.u32 %s28, 1
          %s310 = smul.addr %s309, 128
          %s311 = scalar_lea.vmem [#allocation4], %s310
          %s312 = smul.u32 4, %s18
          %s313 = smul.addr %s312, 8
          %s314 = scalar_lea.vmem %s0, %s313
          // Predicated region
          $region57: #{spatial_gate_forward.1} parent=55 // pred_check
            _
          $region58: #{spatial_gate_forward.1} parent=55 // pred_check_branch
            %316 = sbr.rel (0) target = $region60
          $region59: #{spatial_gate_forward.1} parent=55 // pred_region
            // Predicated region
            $region61: #{spatial_gate_forward.1} parent=59 // pred_check
              _
            $region62: #{spatial_gate_forward.1} parent=59 // pred_check_branch
              %318 = sbr.rel (0) target = $region64
            $region63: #{spatial_gate_forward.1} parent=59 // pred_region
              loop: start=0, step=1, limit=1
              $region65: #{spatial_gate_forward.1} parent=63 // loop_pre_header
                _
              $region66: #{spatial_gate_forward.1} parent=63 // loop_header
                %s320 = sphi 0, %s324
                %p321 = scmp.ge.s32.totalorder %s320, 1
                %s325 = sphi %s314, %s314
                %s326 = sphi %s311, %s311
              $region67: #{spatial_gate_forward.1} parent=63 // loop_header_branch
                %323 = sbr.rel (%p321) target = $region71
              $region68: #{spatial_gate_forward.1} parent=63 // loop_body
                %v327 = vld [vmem:[%s325] sm:$0xff]
                %328 = vst [vmem:[%s326] sm:$0xff] %v327
                %v329 = vld [vmem:[%s325 + $0x8] sm:$0xff]
                %330 = vst [vmem:[%s326 + $0x8] sm:$0xff] %v329
                %v331 = vld [vmem:[%s325 + $0x10] sm:$0xff]
                %332 = vst [vmem:[%s326 + $0x10] sm:$0xff] %v331
                %v333 = vld [vmem:[%s325 + $0x18] sm:$0xff]
                %334 = vst [vmem:[%s326 + $0x18] sm:$0xff] %v333
                %v335 = vld [vmem:[%s325 + $0x40] sm:$0xff]
                %336 = vst [vmem:[%s326 + $0x20] sm:$0xff] %v335
                %v337 = vld [vmem:[%s325 + $0x48] sm:$0xff]
                %338 = vst [vmem:[%s326 + $0x28] sm:$0xff] %v337
                %v339 = vld [vmem:[%s325 + $0x50] sm:$0xff]
                %340 = vst [vmem:[%s326 + $0x30] sm:$0xff] %v339
                %v341 = vld [vmem:[%s325 + $0x58] sm:$0xff]
                %342 = vst [vmem:[%s326 + $0x38] sm:$0xff] %v341
                %v343 = vld [vmem:[%s325 + $0x80] sm:$0xff]
                %344 = vst [vmem:[%s326 + $0x40] sm:$0xff] %v343
                %v345 = vld [vmem:[%s325 + $0x88] sm:$0xff]
                %346 = vst [vmem:[%s326 + $0x48] sm:$0xff] %v345
                %v347 = vld [vmem:[%s325 + $0x90] sm:$0xff]
                %348 = vst [vmem:[%s326 + $0x50] sm:$0xff] %v347
                %v349 = vld [vmem:[%s325 + $0x98] sm:$0xff]
                %350 = vst [vmem:[%s326 + $0x58] sm:$0xff] %v349
                %v351 = vld [vmem:[%s325 + $0xc0] sm:$0xff]
                %352 = vst [vmem:[%s326 + $0x60] sm:$0xff] %v351
                %v353 = vld [vmem:[%s325 + $0xc8] sm:$0xff]
                %354 = vst [vmem:[%s326 + $0x68] sm:$0xff] %v353
                %v355 = vld [vmem:[%s325 + $0xd0] sm:$0xff]
                %356 = vst [vmem:[%s326 + $0x70] sm:$0xff] %v355
                %v357 = vld [vmem:[%s325 + $0xd8] sm:$0xff]
                %358 = vst [vmem:[%s326 + $0x78] sm:$0xff] %v357
              $region69: #{spatial_gate_forward.1} parent=63 // loop_footer
                %s324 = sadd.s32 1, %s320
              $region70: #{spatial_gate_forward.1} parent=63 // loop_footer_branch
                %319 = sbr.rel target = $region66
              $region71: #{spatial_gate_forward.1} parent=63 // loop_exit
                _
            $region64: #{spatial_gate_forward.1} parent=59 // pred_fallthru
              _
            // Predicated region
            $region72: #{spatial_gate_forward.1} parent=59 // pred_check
              _
            $region73: #{spatial_gate_forward.1} parent=59 // pred_check_branch
              %360 = sbr.rel target = $region75
            $region74: #{spatial_gate_forward.1} parent=59 // pred_region
              _
            $region75: #{spatial_gate_forward.1} parent=59 // pred_fallthru
              _
          $region60: #{spatial_gate_forward.1} parent=55 // pred_fallthru
            _
          %361 = vnop
        $region56: #{spatial_gate_forward.1} parent=51 // pred_fallthru
          _
      $region52: #{spatial_gate_forward.1} parent=5 // pred_fallthru
        _
      %p362 = scmp.le.s32.totalorder 1, %s18
      %p363 = scmp.lt.s32.totalorder %s18, 3
      %p364 = pnand %p362, %p363
      %p365 = pneg %p364
      // Predicated region
      $region76: #{spatial_gate_forward.1} parent=5 // pred_check
        _
      $region77: #{spatial_gate_forward.1} parent=5 // pred_check_branch
        %367 = sbr.rel (%p364) target = $region79
      $region78: #{spatial_gate_forward.1} parent=5 // pred_region
        %s368 = ssub.s32 %s18, 1
        %s369 = sand.u32 %s31, 1
        %s370 = sand.u32 %s31, 1
        %s371 = smul.addr %s370, 128
        %s372 = scalar_lea.vmem [#allocation4], %s371
        // Predicated region
        $region80: #{spatial_gate_forward.1} parent=78 // pred_check
          %p373 = pneg %p44
        $region81: #{spatial_gate_forward.1} parent=78 // pred_check_branch
          %375 = sbr.rel (%p373) target = $region83
        $region82: #{spatial_gate_forward.1} parent=78 // pred_region
          _
        $region83: #{spatial_gate_forward.1} parent=78 // pred_fallthru
          _
        %s376 = sand.u32 %s31, 1
        %s377 = sand.u32 %s31, 1
        %s378 = smul.addr %s377, 128
        %s379 = scalar_lea.vmem [#allocation4], %s378
        %p380 = pneg %p44
        %p381 = pneg %p41
        %p382 = pneg %p65
        %p383 = pneg %p62
        %p384 = pneg %p86
        %p385 = pneg %p83
        %p386 = pneg %p107
        %p387 = pneg %p104
        %p388 = pneg %p128
        %p389 = pneg %p125
        %p390 = pneg %p149
        %p391 = pneg %p146
        %p392 = pneg %p170
        %p393 = pneg %p167
        %p394 = pneg %p191
        %p395 = pneg %p188
        %p396 = pneg %p212
        %p397 = pneg %p209
        %p398 = pneg %p233
        %p399 = pneg %p230
        %p400 = pneg %p259
        %p401 = pneg %p256
        %s402 = sand.u32 %s246, 1
        %s403 = sand.u32 %s246, 1
        %s404 = smul.addr %s403, 128
        %s405 = scalar_lea.vmem [#allocation5], %s404
        %s406 = smul.u32 4, %s23
        %s407 = smul.u32 4, %s23
        %v408 = vld [vmem:[%s372] sm:$0xff]
        %v409 = vld [vmem:[%s372 + $0x8] sm:$0xff]
        %v410 = vld [vmem:[%s372 + $0x10] sm:$0xff]
        %v411 = vld [vmem:[%s372 + $0x18] sm:$0xff]
        %v412 = vld [vmem:[%s372 + $0x20] sm:$0xff]
        %v413 = vld [vmem:[%s372 + $0x28] sm:$0xff]
        %v414 = vld [vmem:[%s372 + $0x30] sm:$0xff]
        %v415 = vld [vmem:[%s372 + $0x38] sm:$0xff]
        %v416 = vld [vmem:[%s372 + $0x40] sm:$0xff]
        %v417 = vld [vmem:[%s372 + $0x48] sm:$0xff]
        %v418 = vld [vmem:[%s372 + $0x50] sm:$0xff]
        %v419 = vld [vmem:[%s372 + $0x58] sm:$0xff]
        %v420 = vld [vmem:[%s372 + $0x60] sm:$0xff]
        %v421 = vld [vmem:[%s372 + $0x68] sm:$0xff]
        %v422 = vld [vmem:[%s372 + $0x70] sm:$0xff]
        %v423 = vld [vmem:[%s372 + $0x78] sm:$0xff]
        %v424 = vld [vmem:[%s1] sm:$0xff]
        %v425 = vld [vmem:[%s1 + $0x8] sm:$0xff]
        %v426 = vld [vmem:[%s1 + $0x10] sm:$0xff]
        %v427 = vld [vmem:[%s1 + $0x18] sm:$0xff]
        %v428 = vld [vmem:[%s1 + $0x20] sm:$0x1]
        %v429 = vld [vmem:[%s1 + $0x28] sm:$0x1]
        %v430 = vld [vmem:[%s1 + $0x30] sm:$0x1]
        %v431 = vld [vmem:[%s1 + $0x38] sm:$0x1]
        %v432 = vld [vmem:[%s2] sm:$0xff]
        %v433 = vld [vmem:[%s3] sm:$0xff]
        %435 = vset.pattern.permute.xlu0 0
        %436 = vperm.xlu0 %435, %v433
        %v437 = vpop.permute.xlu0 %436
        %vm439 = vcmask 261120
        %v441 = vsel %vm439, %v432, 0
        %443 = vmatprep.subr.mxu0 0.0
        %444 = vmatpush1.msra.mxu0 0.0
        %445 = vmatprep.subr.mxu0 0.0
        %446 = vmatpush1.msra.mxu0 0.0
        %447 = vmatprep.subr.mxu0 0.0
        %448 = vmatpush1.msra.mxu0 0.0
        %449 = vmatprep.subr.mxu0 0.0
        %450 = vmatpush1.msra.mxu0 0.0
        %451 = vmatprep.subr.mxu0 0.0
        %452 = vmatpush1.msra.mxu0 0.0
        %453 = vmatprep.subr.mxu0 0.0
        %454 = vmatpush1.msra.mxu0 0.0
        %455 = vmatprep.subr.mxu0 0.0
        %456 = vmatpush1.msra.mxu0 0.0
        %457 = vmatprep.subr.mxu0 0.0
        %458 = vmatpush1.msra.mxu0 0.0
        %459 = vmatprep.subr.mxu0 0.0
        %460 = vmatpush1.msra.mxu0 0.0
        %461 = vmatprep.subr.mxu0 0.0
        %462 = vmatpush1.msra.mxu0 0.0
        %463 = vmatprep.subr.mxu0 0.0
        %464 = vmatpush1.msra.mxu0 0.0
        %465 = vmatprep.subr.mxu0 0.0
        %466 = vmatpush1.msra.mxu0 0.0
        %467 = vmatprep.subr.mxu0 %v421
        %468 = vmatpush1.msra.mxu0 %v420
        %469 = vmatprep.subr.mxu0 %v417
        %470 = vmatpush1.msra.mxu0 %v416
        %471 = vmatprep.subr.mxu0 %v413
        %472 = vmatpush1.msra.mxu0 %v412
        %473 = vmatprep.subr.mxu0 %v409
        %474 = vmatpush1.msra.mxu0 %v408
        %475 = vmatprep.subr.mxu0 0.0
        %476 = vmatpush2.msra.mxu0 0.0
        %477 = vmatprep.subr.mxu0 0.0
        %478 = vmatpush2.msra.mxu0 0.0
        %479 = vmatprep.subr.mxu0 0.0
        %480 = vmatpush2.msra.mxu0 0.0
        %481 = vmatprep.subr.mxu0 0.0
        %482 = vmatpush2.msra.mxu0 0.0
        %483 = vmatprep.subr.mxu0 0.0
        %484 = vmatpush2.msra.mxu0 0.0
        %485 = vmatprep.subr.mxu0 0.0
        %486 = vmatpush2.msra.mxu0 0.0
        %487 = vmatprep.subr.mxu0 0.0
        %488 = vmatpush2.msra.mxu0 0.0
        %489 = vmatprep.subr.mxu0 0.0
        %490 = vmatpush2.msra.mxu0 0.0
        %491 = vmatprep.subr.mxu0 0.0
        %492 = vmatpush2.msra.mxu0 0.0
        %493 = vmatprep.subr.mxu0 0.0
        %494 = vmatpush2.msra.mxu0 0.0
        %495 = vmatprep.subr.mxu0 0.0
        %496 = vmatpush2.msra.mxu0 0.0
        %497 = vmatprep.subr.mxu0 0.0
        %498 = vmatpush2.msra.mxu0 0.0
        %499 = vmatprep.subr.mxu0 0.0
        %500 = vmatpush2.msra.mxu0 0.0
        %501 = vmatprep.subr.mxu0 0.0
        %502 = vmatpush2.msra.mxu0 0.0
        %503 = vmatprep.subr.mxu0 0.0
        %504 = vmatpush2.msra.mxu0 0.0
        %505 = vmatprep.subr.mxu0 0.0
        %506 = vmatpush2.msra.mxu0 0.0
        %507 = vmatprep.mubr.f32.mxu0 0.0
        %508 = vmatmul.mubr.f32.gmra.mxu0 %v441
        %v509 = vpop.f32.mrf.mxu0
        %v510 = vadd.f32 %v437, %v509
        %v511 = vpop.f32.mrf.mxu0
        %v512 = vadd.f32 %v437, %v511
        %513 = vdwg.mxu0
        %514 = vmatprep.subr.mxu0 0.0
        %515 = vmatpush1.msra.mxu0 0.0
        %516 = vmatprep.subr.mxu0 0.0
        %517 = vmatpush1.msra.mxu0 0.0
        %518 = vmatprep.subr.mxu0 0.0
        %519 = vmatpush1.msra.mxu0 0.0
        %520 = vmatprep.subr.mxu0 0.0
        %521 = vmatpush1.msra.mxu0 0.0
        %522 = vmatprep.subr.mxu0 0.0
        %523 = vmatpush1.msra.mxu0 0.0
        %524 = vmatprep.subr.mxu0 0.0
        %525 = vmatpush1.msra.mxu0 0.0
        %526 = vmatprep.subr.mxu0 0.0
        %527 = vmatpush1.msra.mxu0 0.0
        %528 = vmatprep.subr.mxu0 0.0
        %529 = vmatpush1.msra.mxu0 0.0
        %530 = vmatprep.subr.mxu0 0.0
        %531 = vmatpush1.msra.mxu0 0.0
        %532 = vmatprep.subr.mxu0 0.0
        %533 = vmatpush1.msra.mxu0 0.0
        %534 = vmatprep.subr.mxu0 0.0
        %535 = vmatpush1.msra.mxu0 0.0
        %536 = vmatprep.subr.mxu0 0.0
        %537 = vmatpush1.msra.mxu0 0.0
        %538 = vmatprep.subr.mxu0 %v423
        %539 = vmatpush1.msra.mxu0 %v422
        %540 = vmatprep.subr.mxu0 %v419
        %541 = vmatpush1.msra.mxu0 %v418
        %542 = vmatprep.subr.mxu0 %v415
        %543 = vmatpush1.msra.mxu0 %v414
        %544 = vmatprep.subr.mxu0 %v411
        %545 = vmatpush1.msra.mxu0 %v410
        %546 = vmatprep.subr.mxu0 0.0
        %547 = vmatpush2.msra.mxu0 0.0
        %548 = vmatprep.subr.mxu0 0.0
        %549 = vmatpush2.msra.mxu0 0.0
        %550 = vmatprep.subr.mxu0 0.0
        %551 = vmatpush2.msra.mxu0 0.0
        %552 = vmatprep.subr.mxu0 0.0
        %553 = vmatpush2.msra.mxu0 0.0
        %554 = vmatprep.subr.mxu0 0.0
        %555 = vmatpush2.msra.mxu0 0.0
        %556 = vmatprep.subr.mxu0 0.0
        %557 = vmatpush2.msra.mxu0 0.0
        %558 = vmatprep.subr.mxu0 0.0
        %559 = vmatpush2.msra.mxu0 0.0
        %560 = vmatprep.subr.mxu0 0.0
        %561 = vmatpush2.msra.mxu0 0.0
        %562 = vmatprep.subr.mxu0 0.0
        %563 = vmatpush2.msra.mxu0 0.0
        %564 = vmatprep.subr.mxu0 0.0
        %565 = vmatpush2.msra.mxu0 0.0
        %566 = vmatprep.subr.mxu0 0.0
        %567 = vmatpush2.msra.mxu0 0.0
        %568 = vmatprep.subr.mxu0 0.0
        %569 = vmatpush2.msra.mxu0 0.0
        %570 = vmatprep.subr.mxu0 0.0
        %571 = vmatpush2.msra.mxu0 0.0
        %572 = vmatprep.subr.mxu0 0.0
        %573 = vmatpush2.msra.mxu0 0.0
        %574 = vmatprep.subr.mxu0 0.0
        %575 = vmatpush2.msra.mxu0 0.0
        %576 = vmatprep.subr.mxu0 0.0
        %577 = vmatpush2.msra.mxu0 0.0
        %578 = vmatprep.mubr.f32.mxu0 0.0
        %579 = vmatmul.mubr.f32.gmra.mxu0 %v441
        %v580 = vpop.f32.mrf.mxu0
        %v581 = vadd.f32 %v437, %v580
        %v582 = vpop.f32.mrf.mxu0
        %v583 = vadd.f32 %v437, %v582
        %584 = vdwg.mxu0
        %v585 = vmax.f32 %v510, 0.0
        %v586 = vmax.f32 %v512, 0.0
        %v587 = vmax.f32 %v581, 0.0
        %v588 = vmax.f32 %v583, 0.0
        %589 = vrot.lane.b32.xlu0 %v585, 68
        %v590 = vpop.permute.xlu0 %589
        %591 = vrot.lane.b32.xlu0 %v586, 68
        %v592 = vpop.permute.xlu0 %591
        %593 = vrot.lane.b32.xlu0 %v587, 68
        %v594 = vpop.permute.xlu0 %593
        %595 = vrot.lane.b32.xlu0 %v588, 68
        %v596 = vpop.permute.xlu0 %595
        %v597 = vlaneseq
        %v598 = vand.u32 %v597, 127
        %vm599 = vcmp.lt.s32.totalorder %v598, 68
        %v600 = vsel %vm599, %v594, %v596
        %v601 = vsel %vm599, %v592, %v594
        %v602 = vsel %vm599, %v590, %v592
        %v603 = vsel %vm599, %v596, %v590
        %v604 = vlaneseq
        %v605 = vshrl.u32 %v604, 7
        %v606 = vsub.s32 0, %v605
        %v607 = vrot.slane %v424, %v606
        %v608 = vlaneseq
        %v609 = vshrl.u32 %v608, 7
        %v610 = vsub.s32 0, %v609
        %v611 = vrot.slane %v425, %v610
        %v612 = vlaneseq
        %v613 = vshrl.u32 %v612, 7
        %v614 = vsub.s32 0, %v613
        %v615 = vrot.slane %v426, %v614
        %v616 = vlaneseq
        %v617 = vshrl.u32 %v616, 7
        %v618 = vsub.s32 0, %v617
        %v619 = vrot.slane %v427, %v618
        %v620 = vmul.f32 %v603, %v607
        %v621 = vmul.f32 %v602, %v611
        %v622 = vmul.f32 %v601, %v615
        %v623 = vmul.f32 %v600, %v619
        %624 = vst [vmem:[#allocation2] sm:$0xff] %v620
        %625 = vst [vmem:[#allocation2 + $0x8] sm:$0xff] %v621
        %626 = vst [vmem:[#allocation2 + $0x10] sm:$0xff] %v622
        %627 = vst [vmem:[#allocation2 + $0x18] sm:$0xff] %v623
        %628 = vrot.lane.b32.xlu0 %v585, 64
        %v629 = vpop.permute.xlu0 %628
        %630 = vrot.lane.b32.xlu0 %v586, 64
        %v631 = vpop.permute.xlu0 %630
        %632 = vrot.lane.b32.xlu0 %v587, 64
        %v633 = vpop.permute.xlu0 %632
        %634 = vrot.lane.b32.xlu0 %v588, 64
        %v635 = vpop.permute.xlu0 %634
        %vm636 = vcmp.lt.s32.totalorder %v598, 64
        %v637 = vsel %vm636, %v633, %v635
        %v638 = vsel %vm636, %v631, %v633
        %v639 = vsel %vm636, %v629, %v631
        %v640 = vsel %vm636, %v635, %v629
        %v641 = vlaneseq
        %v642 = vshrl.u32 %v641, 7
        %v643 = vsub.s32 1, %v642
        %v644 = vrot.slane %v424, %v643
        %v645 = vlaneseq
        %v646 = vshrl.u32 %v645, 7
        %v647 = vsub.s32 1, %v646
        %v648 = vrot.slane %v425, %v647
        %v649 = vlaneseq
        %v650 = vshrl.u32 %v649, 7
        %v651 = vsub.s32 1, %v650
        %v652 = vrot.slane %v426, %v651
        %v653 = vlaneseq
        %v654 = vshrl.u32 %v653, 7
        %v655 = vsub.s32 1, %v654
        %v656 = vrot.slane %v427, %v655
        %v657 = vmul.f32 %v640, %v644
        %v658 = vmul.f32 %v639, %v648
        %v659 = vmul.f32 %v638, %v652
        %v660 = vmul.f32 %v637, %v656
        %661 = vst [vmem:[#allocation2 + $0x20] sm:$0xff] %v657
        %662 = vst [vmem:[#allocation2 + $0x28] sm:$0xff] %v658
        %663 = vst [vmem:[#allocation2 + $0x30] sm:$0xff] %v659
        %664 = vst [vmem:[#allocation2 + $0x38] sm:$0xff] %v660
        %665 = vrot.lane.b32.xlu0 %v585, 60
        %v666 = vpop.permute.xlu0 %665
        %667 = vrot.lane.b32.xlu0 %v586, 60
        %v668 = vpop.permute.xlu0 %667
        %669 = vrot.lane.b32.xlu0 %v587, 60
        %v670 = vpop.permute.xlu0 %669
        %671 = vrot.lane.b32.xlu0 %v588, 60
        %v672 = vpop.permute.xlu0 %671
        %vm673 = vcmp.lt.s32.totalorder %v598, 60
        %v674 = vsel %vm673, %v670, %v672
        %v675 = vsel %vm673, %v668, %v670
        %v676 = vsel %vm673, %v666, %v668
        %v677 = vsel %vm673, %v672, %v666
        %v678 = vlaneseq
        %v679 = vshrl.u32 %v678, 7
        %v680 = vsub.s32 2, %v679
        %v681 = vrot.slane %v424, %v680
        %v682 = vlaneseq
        %v683 = vshrl.u32 %v682, 7
        %v684 = vsub.s32 2, %v683
        %v685 = vrot.slane %v425, %v684
        %v686 = vlaneseq
        %v687 = vshrl.u32 %v686, 7
        %v688 = vsub.s32 2, %v687
        %v689 = vrot.slane %v426, %v688
        %v690 = vlaneseq
        %v691 = vshrl.u32 %v690, 7
        %v692 = vsub.s32 2, %v691
        %v693 = vrot.slane %v427, %v692
        %v694 = vmul.f32 %v677, %v681
        %v695 = vmul.f32 %v676, %v685
        %v696 = vmul.f32 %v675, %v689
        %v697 = vmul.f32 %v674, %v693
        %698 = vst [vmem:[#allocation2 + $0x40] sm:$0xff] %v694
        %699 = vst [vmem:[#allocation2 + $0x48] sm:$0xff] %v695
        %700 = vst [vmem:[#allocation2 + $0x50] sm:$0xff] %v696
        %701 = vst [vmem:[#allocation2 + $0x58] sm:$0xff] %v697
        %702 = vrot.lane.b32.xlu0 %v585, 4
        %v703 = vpop.permute.xlu0 %702
        %704 = vrot.lane.b32.xlu0 %v586, 4
        %v705 = vpop.permute.xlu0 %704
        %706 = vrot.lane.b32.xlu0 %v587, 4
        %v707 = vpop.permute.xlu0 %706
        %708 = vrot.lane.b32.xlu0 %v588, 4
        %v709 = vpop.permute.xlu0 %708
        %vm710 = vcmp.lt.s32.totalorder %v598, 4
        %v711 = vsel %vm710, %v707, %v709
        %v712 = vsel %vm710, %v705, %v707
        %v713 = vsel %vm710, %v703, %v705
        %v714 = vsel %vm710, %v709, %v703
        %v715 = vlaneseq
        %v716 = vshrl.u32 %v715, 7
        %v717 = vsub.s32 3, %v716
        %v718 = vrot.slane %v424, %v717
        %v719 = vlaneseq
        %v720 = vshrl.u32 %v719, 7
        %v721 = vsub.s32 3, %v720
        %v722 = vrot.slane %v425, %v721
        %v723 = vlaneseq
        %v724 = vshrl.u32 %v723, 7
        %v725 = vsub.s32 3, %v724
        %v726 = vrot.slane %v426, %v725
        %v727 = vlaneseq
        %v728 = vshrl.u32 %v727, 7
        %v729 = vsub.s32 3, %v728
        %v730 = vrot.slane %v427, %v729
        %v731 = vmul.f32 %v714, %v718
        %v732 = vmul.f32 %v713, %v722
        %v733 = vmul.f32 %v712, %v726
        %v734 = vmul.f32 %v711, %v730
        %735 = vst [vmem:[#allocation2 + $0x60] sm:$0xff] %v731
        %736 = vst [vmem:[#allocation2 + $0x68] sm:$0xff] %v732
        %737 = vst [vmem:[#allocation2 + $0x70] sm:$0xff] %v733
        %738 = vst [vmem:[#allocation2 + $0x78] sm:$0xff] %v734
        %739 = vst [vmem:[#allocation2 + $0x80] sm:$0xff] %v585
        %740 = vst [vmem:[#allocation2 + $0x88] sm:$0xff] %v586
        %741 = vst [vmem:[#allocation2 + $0x90] sm:$0xff] %v587
        %742 = vst [vmem:[#allocation2 + $0x98] sm:$0xff] %v588
        %743 = vrot.lane.b32.xlu0 %v585, 124
        %v744 = vpop.permute.xlu0 %743
        %745 = vrot.lane.b32.xlu0 %v586, 124
        %v746 = vpop.permute.xlu0 %745
        %747 = vrot.lane.b32.xlu0 %v587, 124
        %v748 = vpop.permute.xlu0 %747
        %749 = vrot.lane.b32.xlu0 %v588, 124
        %v750 = vpop.permute.xlu0 %749
        %vm751 = vcmp.lt.s32.totalorder %v598, 124
        %v752 = vsel %vm751, %v748, %v750
        %v753 = vsel %vm751, %v746, %v748
        %v754 = vsel %vm751, %v744, %v746
        %v755 = vsel %vm751, %v750, %v744
        %v756 = vlaneseq
        %v757 = vshrl.u32 %v756, 7
        %v758 = vsub.s32 5, %v757
        %v759 = vrot.slane %v424, %v758
        %v760 = vlaneseq
        %v761 = vshrl.u32 %v760, 7
        %v762 = vsub.s32 5, %v761
        %v763 = vrot.slane %v425, %v762
        %v764 = vlaneseq
        %v765 = vshrl.u32 %v764, 7
        %v766 = vsub.s32 5, %v765
        %v767 = vrot.slane %v426, %v766
        %v768 = vlaneseq
        %v769 = vshrl.u32 %v768, 7
        %v770 = vsub.s32 5, %v769
        %v771 = vrot.slane %v427, %v770
        %v772 = vmul.f32 %v754, %v759
        %v773 = vmul.f32 %v753, %v763
        %v774 = vmul.f32 %v752, %v767
        %v775 = vmul.f32 %v755, %v771
        %776 = vst [vmem:[#allocation2 + $0xa0] sm:$0xff] %v772
        %777 = vst [vmem:[#allocation2 + $0xa8] sm:$0xff] %v773
        %778 = vst [vmem:[#allocation2 + $0xb0] sm:$0xff] %v774
        %779 = vst [vmem:[#allocation2 + $0xb8] sm:$0xff] %v775
        %v780 = vlaneseq
        %v781 = vshrl.u32 %v780, 7
        %v782 = vsub.s32 6, %v781
        %v783 = vrot.slane %v424, %v782
        %v784 = vlaneseq
        %v785 = vshrl.u32 %v784, 7
        %v786 = vsub.s32 6, %v785
        %v787 = vrot.slane %v425, %v786
        %v788 = vlaneseq
        %v789 = vshrl.u32 %v788, 7
        %v790 = vsub.s32 6, %v789
        %v791 = vrot.slane %v426, %v790
        %v792 = vlaneseq
        %v793 = vshrl.u32 %v792, 7
        %v794 = vsub.s32 6, %v793
        %v795 = vrot.slane %v427, %v794
        %v796 = vmul.f32 %v602, %v783
        %v797 = vmul.f32 %v601, %v787
        %v798 = vmul.f32 %v600, %v791
        %v799 = vmul.f32 %v603, %v795
        %800 = vst [vmem:[#allocation2 + $0xc0] sm:$0xff] %v796
        %801 = vst [vmem:[#allocation2 + $0xc8] sm:$0xff] %v797
        %802 = vst [vmem:[#allocation2 + $0xd0] sm:$0xff] %v798
        %803 = vst [vmem:[#allocation2 + $0xd8] sm:$0xff] %v799
        %v804 = vlaneseq
        %v805 = vshrl.u32 %v804, 7
        %v806 = vsub.s32 7, %v805
        %v807 = vrot.slane %v424, %v806
        %v808 = vlaneseq
        %v809 = vshrl.u32 %v808, 7
        %v810 = vsub.s32 7, %v809
        %v811 = vrot.slane %v425, %v810
        %v812 = vlaneseq
        %v813 = vshrl.u32 %v812, 7
        %v814 = vsub.s32 7, %v813
        %v815 = vrot.slane %v426, %v814
        %v816 = vlaneseq
        %v817 = vshrl.u32 %v816, 7
        %v818 = vsub.s32 7, %v817
        %v819 = vrot.slane %v427, %v818
        %v820 = vmul.f32 %v639, %v807
        %v821 = vmul.f32 %v638, %v811
        %v822 = vmul.f32 %v637, %v815
        %v823 = vmul.f32 %v640, %v819
        %824 = vst [vmem:[#allocation2 + $0xe0] sm:$0xff] %v820
        %825 = vst [vmem:[#allocation2 + $0xe8] sm:$0xff] %v821
        %826 = vst [vmem:[#allocation2 + $0xf0] sm:$0xff] %v822
        %827 = vst [vmem:[#allocation2 + $0xf8] sm:$0xff] %v823
        %v828 = vlaneseq
        %v829 = vshrl.u32 %v828, 7
        %v830 = vsub.s32 0, %v829
        %v831 = vrot.slane %v428, %v830
        %v832 = vlaneseq
        %v833 = vshrl.u32 %v832, 7
        %v834 = vsub.s32 0, %v833
        %v835 = vrot.slane %v429, %v834
        %v836 = vlaneseq
        %v837 = vshrl.u32 %v836, 7
        %v838 = vsub.s32 0, %v837
        %v839 = vrot.slane %v430, %v838
        %v840 = vlaneseq
        %v841 = vshrl.u32 %v840, 7
        %v842 = vsub.s32 0, %v841
        %v843 = vrot.slane %v431, %v842
        %v844 = vmul.f32 %v676, %v831
        %v845 = vmul.f32 %v675, %v835
        %v846 = vmul.f32 %v674, %v839
        %v847 = vmul.f32 %v677, %v843
        %848 = vst [vmem:[#allocation2 + $0x100] sm:$0xff] %v844
        %849 = vst [vmem:[#allocation2 + $0x108] sm:$0xff] %v845
        %850 = vst [vmem:[#allocation2 + $0x110] sm:$0xff] %v846
        %851 = vst [vmem:[#allocation2 + $0x118] sm:$0xff] %v847
        %v852 = vld [vmem:[%s4] sm:$0xff]
        %v853 = vld [vmem:[#allocation2] sm:$0xff]
        %v854 = vld [vmem:[#allocation2 + $0x8] sm:$0xff]
        %v855 = vld [vmem:[#allocation2 + $0x10] sm:$0xff]
        %v856 = vld [vmem:[#allocation2 + $0x18] sm:$0xff]
        %v857 = vld [vmem:[#allocation2 + $0x20] sm:$0xff]
        %v858 = vld [vmem:[#allocation2 + $0x28] sm:$0xff]
        %v859 = vld [vmem:[#allocation2 + $0x30] sm:$0xff]
        %v860 = vld [vmem:[#allocation2 + $0x38] sm:$0xff]
        %v861 = vld [vmem:[#allocation2 + $0x40] sm:$0xff]
        %v862 = vld [vmem:[#allocation2 + $0x48] sm:$0xff]
        %v863 = vld [vmem:[#allocation2 + $0x50] sm:$0xff]
        %v864 = vld [vmem:[#allocation2 + $0x58] sm:$0xff]
        %v865 = vld [vmem:[#allocation2 + $0x60] sm:$0xff]
        %v866 = vld [vmem:[#allocation2 + $0x68] sm:$0xff]
        %v867 = vld [vmem:[#allocation2 + $0x70] sm:$0xff]
        %v868 = vld [vmem:[#allocation2 + $0x78] sm:$0xff]
        %v869 = vld [vmem:[#allocation2 + $0x80] sm:$0xff]
        %v870 = vld [vmem:[#allocation2 + $0x88] sm:$0xff]
        %v871 = vld [vmem:[#allocation2 + $0x90] sm:$0xff]
        %v872 = vld [vmem:[#allocation2 + $0x98] sm:$0xff]
        %v873 = vld [vmem:[#allocation2 + $0xa0] sm:$0xff]
        %v874 = vld [vmem:[#allocation2 + $0xa8] sm:$0xff]
        %v875 = vld [vmem:[#allocation2 + $0xb0] sm:$0xff]
        %v876 = vld [vmem:[#allocation2 + $0xb8] sm:$0xff]
        %v877 = vld [vmem:[#allocation2 + $0xc0] sm:$0xff]
        %v878 = vld [vmem:[#allocation2 + $0xc8] sm:$0xff]
        %v879 = vld [vmem:[#allocation2 + $0xd0] sm:$0xff]
        %v880 = vld [vmem:[#allocation2 + $0xd8] sm:$0xff]
        %v881 = vld [vmem:[#allocation2 + $0xe0] sm:$0xff]
        %v882 = vld [vmem:[#allocation2 + $0xe8] sm:$0xff]
        %v883 = vld [vmem:[#allocation2 + $0xf0] sm:$0xff]
        %v884 = vld [vmem:[#allocation2 + $0xf8] sm:$0xff]
        %v885 = vld [vmem:[#allocation2 + $0x100] sm:$0xff]
        %v886 = vld [vmem:[#allocation2 + $0x108] sm:$0xff]
        %v887 = vld [vmem:[#allocation2 + $0x110] sm:$0xff]
        %v888 = vld [vmem:[#allocation2 + $0x118] sm:$0xff]
        %v889 = vld [vmem:[%s5] sm:$0xff]
        %891 = vset.pattern.permute.xlu0 0
        %892 = vperm.xlu0 %891, %v889
        %v893 = vpop.permute.xlu0 %892
        %vm895 = vcmask 588800
        %v897 = vsel %vm895, %v852, 0
        %899 = vmatprep.subr.mxu0 0.0
        %900 = vmatpush1.msra.mxu0 0.0
        %901 = vmatprep.subr.mxu0 0.0
        %902 = vmatpush1.msra.mxu0 0.0
        %903 = vmatprep.subr.mxu0 0.0
        %904 = vmatpush1.msra.mxu0 0.0
        %905 = vmatprep.subr.mxu0 0.0
        %906 = vmatpush1.msra.mxu0 0.0
        %907 = vmatprep.subr.mxu0 0.0
        %908 = vmatpush1.msra.mxu0 0.0
        %909 = vmatprep.subr.mxu0 0.0
        %910 = vmatpush1.msra.mxu0 0.0
        %911 = vmatprep.subr.mxu0 0.0
        %912 = vmatpush1.msra.mxu0 0.0
        %913 = vmatprep.subr.mxu0 %v886
        %914 = vmatpush1.msra.mxu0 %v885
        %915 = vmatprep.subr.mxu0 %v882
        %916 = vmatpush1.msra.mxu0 %v881
        %917 = vmatprep.subr.mxu0 %v878
        %918 = vmatpush1.msra.mxu0 %v877
        %919 = vmatprep.subr.mxu0 %v874
        %920 = vmatpush1.msra.mxu0 %v873
        %921 = vmatprep.subr.mxu0 %v870
        %922 = vmatpush1.msra.mxu0 %v869
        %923 = vmatprep.subr.mxu0 %v866
        %924 = vmatpush1.msra.mxu0 %v865
        %925 = vmatprep.subr.mxu0 %v862
        %926 = vmatpush1.msra.mxu0 %v861
        %927 = vmatprep.subr.mxu0 %v858
        %928 = vmatpush1.msra.mxu0 %v857
        %929 = vmatprep.subr.mxu0 %v854
        %930 = vmatpush1.msra.mxu0 %v853
        %931 = vmatprep.subr.mxu0 0.0
        %932 = vmatpush2.msra.mxu0 0.0
        %933 = vmatprep.subr.mxu0 0.0
        %934 = vmatpush2.msra.mxu0 0.0
        %935 = vmatprep.subr.mxu0 0.0
        %936 = vmatpush2.msra.mxu0 0.0
        %937 = vmatprep.subr.mxu0 0.0
        %938 = vmatpush2.msra.mxu0 0.0
        %939 = vmatprep.subr.mxu0 0.0
        %940 = vmatpush2.msra.mxu0 0.0
        %941 = vmatprep.subr.mxu0 0.0
        %942 = vmatpush2.msra.mxu0 0.0
        %943 = vmatprep.subr.mxu0 0.0
        %944 = vmatpush2.msra.mxu0 0.0
        %945 = vmatprep.subr.mxu0 0.0
        %946 = vmatpush2.msra.mxu0 0.0
        %947 = vmatprep.subr.mxu0 0.0
        %948 = vmatpush2.msra.mxu0 0.0
        %949 = vmatprep.subr.mxu0 0.0
        %950 = vmatpush2.msra.mxu0 0.0
        %951 = vmatprep.subr.mxu0 0.0
        %952 = vmatpush2.msra.mxu0 0.0
        %953 = vmatprep.subr.mxu0 0.0
        %954 = vmatpush2.msra.mxu0 0.0
        %955 = vmatprep.subr.mxu0 0.0
        %956 = vmatpush2.msra.mxu0 0.0
        %957 = vmatprep.subr.mxu0 0.0
        %958 = vmatpush2.msra.mxu0 0.0
        %959 = vmatprep.subr.mxu0 0.0
        %960 = vmatpush2.msra.mxu0 0.0
        %961 = vmatprep.subr.mxu0 0.0
        %962 = vmatpush2.msra.mxu0 0.0
        %963 = vmatprep.mubr.f32.mxu0 0.0
        %964 = vmatmul.mubr.f32.gmra.mxu0 %v897
        %v965 = vpop.f32.mrf.mxu0
        %v966 = vadd.f32 %v893, %v965
        %v967 = vpop.f32.mrf.mxu0
        %v968 = vadd.f32 %v893, %v967
        %969 = vdwg.mxu0
        %970 = vmatprep.subr.mxu0 0.0
        %971 = vmatpush1.msra.mxu0 0.0
        %972 = vmatprep.subr.mxu0 0.0
        %973 = vmatpush1.msra.mxu0 0.0
        %974 = vmatprep.subr.mxu0 0.0
        %975 = vmatpush1.msra.mxu0 0.0
        %976 = vmatprep.subr.mxu0 0.0
        %977 = vmatpush1.msra.mxu0 0.0
        %978 = vmatprep.subr.mxu0 0.0
        %979 = vmatpush1.msra.mxu0 0.0
        %980 = vmatprep.subr.mxu0 0.0
        %981 = vmatpush1.msra.mxu0 0.0
        %982 = vmatprep.subr.mxu0 0.0
        %983 = vmatpush1.msra.mxu0 0.0
        %984 = vmatprep.subr.mxu0 %v888
        %985 = vmatpush1.msra.mxu0 %v887
        %986 = vmatprep.subr.mxu0 %v884
        %987 = vmatpush1.msra.mxu0 %v883
        %988 = vmatprep.subr.mxu0 %v880
        %989 = vmatpush1.msra.mxu0 %v879
        %990 = vmatprep.subr.mxu0 %v876
        %991 = vmatpush1.msra.mxu0 %v875
        %992 = vmatprep.subr.mxu0 %v872
        %993 = vmatpush1.msra.mxu0 %v871
        %994 = vmatprep.subr.mxu0 %v868
        %995 = vmatpush1.msra.mxu0 %v867
        %996 = vmatprep.subr.mxu0 %v864
        %997 = vmatpush1.msra.mxu0 %v863
        %998 = vmatprep.subr.mxu0 %v860
        %999 = vmatpush1.msra.mxu0 %v859
        %1000 = vmatprep.subr.mxu0 %v856
        %1001 = vmatpush1.msra.mxu0 %v855
        %1002 = vmatprep.subr.mxu0 0.0
        %1003 = vmatpush2.msra.mxu0 0.0
        %1004 = vmatprep.subr.mxu0 0.0
        %1005 = vmatpush2.msra.mxu0 0.0
        %1006 = vmatprep.subr.mxu0 0.0
        %1007 = vmatpush2.msra.mxu0 0.0
        %1008 = vmatprep.subr.mxu0 0.0
        %1009 = vmatpush2.msra.mxu0 0.0
        %1010 = vmatprep.subr.mxu0 0.0
        %1011 = vmatpush2.msra.mxu0 0.0
        %1012 = vmatprep.subr.mxu0 0.0
        %1013 = vmatpush2.msra.mxu0 0.0
        %1014 = vmatprep.subr.mxu0 0.0
        %1015 = vmatpush2.msra.mxu0 0.0
        %1016 = vmatprep.subr.mxu0 0.0
        %1017 = vmatpush2.msra.mxu0 0.0
        %1018 = vmatprep.subr.mxu0 0.0
        %1019 = vmatpush2.msra.mxu0 0.0
        %1020 = vmatprep.subr.mxu0 0.0
        %1021 = vmatpush2.msra.mxu0 0.0
        %1022 = vmatprep.subr.mxu0 0.0
        %1023 = vmatpush2.msra.mxu0 0.0
        %1024 = vmatprep.subr.mxu0 0.0
        %1025 = vmatpush2.msra.mxu0 0.0
        %1026 = vmatprep.subr.mxu0 0.0
        %1027 = vmatpush2.msra.mxu0 0.0
        %1028 = vmatprep.subr.mxu0 0.0
        %1029 = vmatpush2.msra.mxu0 0.0
        %1030 = vmatprep.subr.mxu0 0.0
        %1031 = vmatpush2.msra.mxu0 0.0
        %1032 = vmatprep.subr.mxu0 0.0
        %1033 = vmatpush2.msra.mxu0 0.0
        %1034 = vmatprep.mubr.f32.mxu0 0.0
        %1035 = vmatmul.mubr.f32.gmra.mxu0 %v897
        %v1036 = vpop.f32.mrf.mxu0
        %v1037 = vadd.f32 %v893, %v1036
        %v1038 = vpop.f32.mrf.mxu0
        %v1039 = vadd.f32 %v893, %v1038
        %1040 = vdwg.mxu0
        %v1041 = vmax.f32 %v966, 0.0
        %v1042 = vmax.f32 %v968, 0.0
        %v1043 = vmax.f32 %v1037, 0.0
        %v1044 = vmax.f32 %v1039, 0.0
        %1045 = vrot.lane.b32.xlu0 %v1041, 68
        %v1046 = vpop.permute.xlu0 %1045
        %1047 = vrot.lane.b32.xlu0 %v1042, 68
        %v1048 = vpop.permute.xlu0 %1047
        %1049 = vrot.lane.b32.xlu0 %v1043, 68
        %v1050 = vpop.permute.xlu0 %1049
        %1051 = vrot.lane.b32.xlu0 %v1044, 68
        %v1052 = vpop.permute.xlu0 %1051
        %v1053 = vsel %vm599, %v1050, %v1052
        %v1054 = vsel %vm599, %v1048, %v1050
        %v1055 = vsel %vm599, %v1046, %v1048
        %v1056 = vsel %vm599, %v1052, %v1046
        %v1057 = vmul.f32 %v1056, %v607
        %v1058 = vmul.f32 %v1055, %v611
        %v1059 = vmul.f32 %v1054, %v615
        %v1060 = vmul.f32 %v1053, %v619
        %1061 = vst [vmem:[#allocation2] sm:$0xff] %v1057
        %1062 = vst [vmem:[#allocation2 + $0x8] sm:$0xff] %v1058
        %1063 = vst [vmem:[#allocation2 + $0x10] sm:$0xff] %v1059
        %1064 = vst [vmem:[#allocation2 + $0x18] sm:$0xff] %v1060
        %1065 = vrot.lane.b32.xlu0 %v1041, 64
        %v1066 = vpop.permute.xlu0 %1065
        %1067 = vrot.lane.b32.xlu0 %v1042, 64
        %v1068 = vpop.permute.xlu0 %1067
        %1069 = vrot.lane.b32.xlu0 %v1043, 64
        %v1070 = vpop.permute.xlu0 %1069
        %1071 = vrot.lane.b32.xlu0 %v1044, 64
        %v1072 = vpop.permute.xlu0 %1071
        %v1073 = vsel %vm636, %v1070, %v1072
        %v1074 = vsel %vm636, %v1068, %v1070
        %v1075 = vsel %vm636, %v1066, %v1068
        %v1076 = vsel %vm636, %v1072, %v1066
        %v1077 = vmul.f32 %v1076, %v644
        %v1078 = vmul.f32 %v1075, %v648
        %v1079 = vmul.f32 %v1074, %v652
        %v1080 = vmul.f32 %v1073, %v656
        %1081 = vst [vmem:[#allocation2 + $0x20] sm:$0xff] %v1077
        %1082 = vst [vmem:[#allocation2 + $0x28] sm:$0xff] %v1078
        %1083 = vst [vmem:[#allocation2 + $0x30] sm:$0xff] %v1079
        %1084 = vst [vmem:[#allocation2 + $0x38] sm:$0xff] %v1080
        %1085 = vrot.lane.b32.xlu0 %v1041, 60
        %v1086 = vpop.permute.xlu0 %1085
        %1087 = vrot.lane.b32.xlu0 %v1042, 60
        %v1088 = vpop.permute.xlu0 %1087
        %1089 = vrot.lane.b32.xlu0 %v1043, 60
        %v1090 = vpop.permute.xlu0 %1089
        %1091 = vrot.lane.b32.xlu0 %v1044, 60
        %v1092 = vpop.permute.xlu0 %1091
        %v1093 = vsel %vm673, %v1090, %v1092
        %v1094 = vsel %vm673, %v1088, %v1090
        %v1095 = vsel %vm673, %v1086, %v1088
        %v1096 = vsel %vm673, %v1092, %v1086
        %v1097 = vmul.f32 %v1096, %v681
        %v1098 = vmul.f32 %v1095, %v685
        %v1099 = vmul.f32 %v1094, %v689
        %v1100 = vmul.f32 %v1093, %v693
        %1101 = vst [vmem:[#allocation2 + $0x40] sm:$0xff] %v1097
        %1102 = vst [vmem:[#allocation2 + $0x48] sm:$0xff] %v1098
        %1103 = vst [vmem:[#allocation2 + $0x50] sm:$0xff] %v1099
        %1104 = vst [vmem:[#allocation2 + $0x58] sm:$0xff] %v1100
        %1105 = vrot.lane.b32.xlu0 %v1041, 4
        %v1106 = vpop.permute.xlu0 %1105
        %1107 = vrot.lane.b32.xlu0 %v1042, 4
        %v1108 = vpop.permute.xlu0 %1107
        %1109 = vrot.lane.b32.xlu0 %v1043, 4
        %v1110 = vpop.permute.xlu0 %1109
        %1111 = vrot.lane.b32.xlu0 %v1044, 4
        %v1112 = vpop.permute.xlu0 %1111
        %v1113 = vsel %vm710, %v1110, %v1112
        %v1114 = vsel %vm710, %v1108, %v1110
        %v1115 = vsel %vm710, %v1106, %v1108
        %v1116 = vsel %vm710, %v1112, %v1106
        %v1117 = vmul.f32 %v1116, %v718
        %v1118 = vmul.f32 %v1115, %v722
        %v1119 = vmul.f32 %v1114, %v726
        %v1120 = vmul.f32 %v1113, %v730
        %1121 = vst [vmem:[#allocation2 + $0x60] sm:$0xff] %v1117
        %1122 = vst [vmem:[#allocation2 + $0x68] sm:$0xff] %v1118
        %1123 = vst [vmem:[#allocation2 + $0x70] sm:$0xff] %v1119
        %1124 = vst [vmem:[#allocation2 + $0x78] sm:$0xff] %v1120
        %1125 = vst [vmem:[#allocation2 + $0x80] sm:$0xff] %v1041
        %1126 = vst [vmem:[#allocation2 + $0x88] sm:$0xff] %v1042
        %1127 = vst [vmem:[#allocation2 + $0x90] sm:$0xff] %v1043
        %1128 = vst [vmem:[#allocation2 + $0x98] sm:$0xff] %v1044
        %1129 = vrot.lane.b32.xlu0 %v1041, 124
        %v1130 = vpop.permute.xlu0 %1129
        %1131 = vrot.lane.b32.xlu0 %v1042, 124
        %v1132 = vpop.permute.xlu0 %1131
        %1133 = vrot.lane.b32.xlu0 %v1043, 124
        %v1134 = vpop.permute.xlu0 %1133
        %1135 = vrot.lane.b32.xlu0 %v1044, 124
        %v1136 = vpop.permute.xlu0 %1135
        %v1137 = vsel %vm751, %v1134, %v1136
        %v1138 = vsel %vm751, %v1132, %v1134
        %v1139 = vsel %vm751, %v1130, %v1132
        %v1140 = vsel %vm751, %v1136, %v1130
        %v1141 = vmul.f32 %v1139, %v759
        %v1142 = vmul.f32 %v1138, %v763
        %v1143 = vmul.f32 %v1137, %v767
        %v1144 = vmul.f32 %v1140, %v771
        %1145 = vst [vmem:[#allocation2 + $0xa0] sm:$0xff] %v1141
        %1146 = vst [vmem:[#allocation2 + $0xa8] sm:$0xff] %v1142
        %1147 = vst [vmem:[#allocation2 + $0xb0] sm:$0xff] %v1143
        %1148 = vst [vmem:[#allocation2 + $0xb8] sm:$0xff] %v1144
        %v1149 = vmul.f32 %v1055, %v783
        %v1150 = vmul.f32 %v1054, %v787
        %v1151 = vmul.f32 %v1053, %v791
        %v1152 = vmul.f32 %v1056, %v795
        %1153 = vst [vmem:[#allocation2 + $0xc0] sm:$0xff] %v1149
        %1154 = vst [vmem:[#allocation2 + $0xc8] sm:$0xff] %v1150
        %1155 = vst [vmem:[#allocation2 + $0xd0] sm:$0xff] %v1151
        %1156 = vst [vmem:[#allocation2 + $0xd8] sm:$0xff] %v1152
        %v1157 = vmul.f32 %v1075, %v807
        %v1158 = vmul.f32 %v1074, %v811
        %v1159 = vmul.f32 %v1073, %v815
        %v1160 = vmul.f32 %v1076, %v819
        %1161 = vst [vmem:[#allocation2 + $0xe0] sm:$0xff] %v1157
        %1162 = vst [vmem:[#allocation2 + $0xe8] sm:$0xff] %v1158
        %1163 = vst [vmem:[#allocation2 + $0xf0] sm:$0xff] %v1159
        %1164 = vst [vmem:[#allocation2 + $0xf8] sm:$0xff] %v1160
        %v1165 = vmul.f32 %v1095, %v831
        %v1166 = vmul.f32 %v1094, %v835
        %v1167 = vmul.f32 %v1093, %v839
        %v1168 = vmul.f32 %v1096, %v843
        %1169 = vst [vmem:[#allocation2 + $0x100] sm:$0xff] %v1165
        %1170 = vst [vmem:[#allocation2 + $0x108] sm:$0xff] %v1166
        %1171 = vst [vmem:[#allocation2 + $0x110] sm:$0xff] %v1167
        %1172 = vst [vmem:[#allocation2 + $0x118] sm:$0xff] %v1168
        %v1173 = vld [vmem:[%s6] sm:$0xff]
        %v1174 = vld [vmem:[#allocation2] sm:$0xff]
        %v1175 = vld [vmem:[#allocation2 + $0x8] sm:$0xff]
        %v1176 = vld [vmem:[#allocation2 + $0x10] sm:$0xff]
        %v1177 = vld [vmem:[#allocation2 + $0x18] sm:$0xff]
        %v1178 = vld [vmem:[#allocation2 + $0x20] sm:$0xff]
        %v1179 = vld [vmem:[#allocation2 + $0x28] sm:$0xff]
        %v1180 = vld [vmem:[#allocation2 + $0x30] sm:$0xff]
        %v1181 = vld [vmem:[#allocation2 + $0x38] sm:$0xff]
        %v1182 = vld [vmem:[#allocation2 + $0x40] sm:$0xff]
        %v1183 = vld [vmem:[#allocation2 + $0x48] sm:$0xff]
        %v1184 = vld [vmem:[#allocation2 + $0x50] sm:$0xff]
        %v1185 = vld [vmem:[#allocation2 + $0x58] sm:$0xff]
        %v1186 = vld [vmem:[#allocation2 + $0x60] sm:$0xff]
        %v1187 = vld [vmem:[#allocation2 + $0x68] sm:$0xff]
        %v1188 = vld [vmem:[#allocation2 + $0x70] sm:$0xff]
        %v1189 = vld [vmem:[#allocation2 + $0x78] sm:$0xff]
        %v1190 = vld [vmem:[#allocation2 + $0x80] sm:$0xff]
        %v1191 = vld [vmem:[#allocation2 + $0x88] sm:$0xff]
        %v1192 = vld [vmem:[#allocation2 + $0x90] sm:$0xff]
        %v1193 = vld [vmem:[#allocation2 + $0x98] sm:$0xff]
        %v1194 = vld [vmem:[#allocation2 + $0xa0] sm:$0xff]
        %v1195 = vld [vmem:[#allocation2 + $0xa8] sm:$0xff]
        %v1196 = vld [vmem:[#allocation2 + $0xb0] sm:$0xff]
        %v1197 = vld [vmem:[#allocation2 + $0xb8] sm:$0xff]
        %v1198 = vld [vmem:[#allocation2 + $0xc0] sm:$0xff]
        %v1199 = vld [vmem:[#allocation2 + $0xc8] sm:$0xff]
        %v1200 = vld [vmem:[#allocation2 + $0xd0] sm:$0xff]
        %v1201 = vld [vmem:[#allocation2 + $0xd8] sm:$0xff]
        %v1202 = vld [vmem:[#allocation2 + $0xe0] sm:$0xff]
        %v1203 = vld [vmem:[#allocation2 + $0xe8] sm:$0xff]
        %v1204 = vld [vmem:[#allocation2 + $0xf0] sm:$0xff]
        %v1205 = vld [vmem:[#allocation2 + $0xf8] sm:$0xff]
        %v1206 = vld [vmem:[#allocation2 + $0x100] sm:$0xff]
        %v1207 = vld [vmem:[#allocation2 + $0x108] sm:$0xff]
        %v1208 = vld [vmem:[#allocation2 + $0x110] sm:$0xff]
        %v1209 = vld [vmem:[#allocation2 + $0x118] sm:$0xff]
        %v1210 = vld [vmem:[%s7] sm:$0xff]
        %1212 = vset.pattern.permute.xlu0 0
        %1213 = vperm.xlu0 %1212, %v1210
        %v1214 = vpop.permute.xlu0 %1213
        %v1217 = vsel %vm895, %v1173, 0
        %1219 = vmatprep.subr.mxu0 0.0
        %1220 = vmatpush1.msra.mxu0 0.0
        %1221 = vmatprep.subr.mxu0 0.0
        %1222 = vmatpush1.msra.mxu0 0.0
        %1223 = vmatprep.subr.mxu0 0.0
        %1224 = vmatpush1.msra.mxu0 0.0
        %1225 = vmatprep.subr.mxu0 0.0
        %1226 = vmatpush1.msra.mxu0 0.0
        %1227 = vmatprep.subr.mxu0 0.0
        %1228 = vmatpush1.msra.mxu0 0.0
        %1229 = vmatprep.subr.mxu0 0.0
        %1230 = vmatpush1.msra.mxu0 0.0
        %1231 = vmatprep.subr.mxu0 0.0
        %1232 = vmatpush1.msra.mxu0 0.0
        %1233 = vmatprep.subr.mxu0 %v1207
        %1234 = vmatpush1.msra.mxu0 %v1206
        %1235 = vmatprep.subr.mxu0 %v1203
        %1236 = vmatpush1.msra.mxu0 %v1202
        %1237 = vmatprep.subr.mxu0 %v1199
        %1238 = vmatpush1.msra.mxu0 %v1198
        %1239 = vmatprep.subr.mxu0 %v1195
        %1240 = vmatpush1.msra.mxu0 %v1194
        %1241 = vmatprep.subr.mxu0 %v1191
        %1242 = vmatpush1.msra.mxu0 %v1190
        %1243 = vmatprep.subr.mxu0 %v1187
        %1244 = vmatpush1.msra.mxu0 %v1186
        %1245 = vmatprep.subr.mxu0 %v1183
        %1246 = vmatpush1.msra.mxu0 %v1182
        %1247 = vmatprep.subr.mxu0 %v1179
        %1248 = vmatpush1.msra.mxu0 %v1178
        %1249 = vmatprep.subr.mxu0 %v1175
        %1250 = vmatpush1.msra.mxu0 %v1174
        %1251 = vmatprep.subr.mxu0 0.0
        %1252 = vmatpush2.msra.mxu0 0.0
        %1253 = vmatprep.subr.mxu0 0.0
        %1254 = vmatpush2.msra.mxu0 0.0
        %1255 = vmatprep.subr.mxu0 0.0
        %1256 = vmatpush2.msra.mxu0 0.0
        %1257 = vmatprep.subr.mxu0 0.0
        %1258 = vmatpush2.msra.mxu0 0.0
        %1259 = vmatprep.subr.mxu0 0.0
        %1260 = vmatpush2.msra.mxu0 0.0
        %1261 = vmatprep.subr.mxu0 0.0
        %1262 = vmatpush2.msra.mxu0 0.0
        %1263 = vmatprep.subr.mxu0 0.0
        %1264 = vmatpush2.msra.mxu0 0.0
        %1265 = vmatprep.subr.mxu0 0.0
        %1266 = vmatpush2.msra.mxu0 0.0
        %1267 = vmatprep.subr.mxu0 0.0
        %1268 = vmatpush2.msra.mxu0 0.0
        %1269 = vmatprep.subr.mxu0 0.0
        %1270 = vmatpush2.msra.mxu0 0.0
        %1271 = vmatprep.subr.mxu0 0.0
        %1272 = vmatpush2.msra.mxu0 0.0
        %1273 = vmatprep.subr.mxu0 0.0
        %1274 = vmatpush2.msra.mxu0 0.0
        %1275 = vmatprep.subr.mxu0 0.0
        %1276 = vmatpush2.msra.mxu0 0.0
        %1277 = vmatprep.subr.mxu0 0.0
        %1278 = vmatpush2.msra.mxu0 0.0
        %1279 = vmatprep.subr.mxu0 0.0
        %1280 = vmatpush2.msra.mxu0 0.0
        %1281 = vmatprep.subr.mxu0 0.0
        %1282 = vmatpush2.msra.mxu0 0.0
        %1283 = vmatprep.mubr.f32.mxu0 0.0
        %1284 = vmatmul.mubr.f32.gmra.mxu0 %v1217
        %v1285 = vpop.f32.mrf.mxu0
        %v1286 = vadd.f32 %v1214, %v1285
        %v1287 = vpop.f32.mrf.mxu0
        %v1288 = vadd.f32 %v1214, %v1287
        %1289 = vdwg.mxu0
        %1290 = vmatprep.subr.mxu0 0.0
        %1291 = vmatpush1.msra.mxu0 0.0
        %1292 = vmatprep.subr.mxu0 0.0
        %1293 = vmatpush1.msra.mxu0 0.0
        %1294 = vmatprep.subr.mxu0 0.0
        %1295 = vmatpush1.msra.mxu0 0.0
        %1296 = vmatprep.subr.mxu0 0.0
        %1297 = vmatpush1.msra.mxu0 0.0
        %1298 = vmatprep.subr.mxu0 0.0
        %1299 = vmatpush1.msra.mxu0 0.0
        %1300 = vmatprep.subr.mxu0 0.0
        %1301 = vmatpush1.msra.mxu0 0.0
        %1302 = vmatprep.subr.mxu0 0.0
        %1303 = vmatpush1.msra.mxu0 0.0
        %1304 = vmatprep.subr.mxu0 %v1209
        %1305 = vmatpush1.msra.mxu0 %v1208
        %1306 = vmatprep.subr.mxu0 %v1205
        %1307 = vmatpush1.msra.mxu0 %v1204
        %1308 = vmatprep.subr.mxu0 %v1201
        %1309 = vmatpush1.msra.mxu0 %v1200
        %1310 = vmatprep.subr.mxu0 %v1197
        %1311 = vmatpush1.msra.mxu0 %v1196
        %1312 = vmatprep.subr.mxu0 %v1193
        %1313 = vmatpush1.msra.mxu0 %v1192
        %1314 = vmatprep.subr.mxu0 %v1189
        %1315 = vmatpush1.msra.mxu0 %v1188
        %1316 = vmatprep.subr.mxu0 %v1185
        %1317 = vmatpush1.msra.mxu0 %v1184
        %1318 = vmatprep.subr.mxu0 %v1181
        %1319 = vmatpush1.msra.mxu0 %v1180
        %1320 = vmatprep.subr.mxu0 %v1177
        %1321 = vmatpush1.msra.mxu0 %v1176
        %1322 = vmatprep.subr.mxu0 0.0
        %1323 = vmatpush2.msra.mxu0 0.0
        %1324 = vmatprep.subr.mxu0 0.0
        %1325 = vmatpush2.msra.mxu0 0.0
        %1326 = vmatprep.subr.mxu0 0.0
        %1327 = vmatpush2.msra.mxu0 0.0
        %1328 = vmatprep.subr.mxu0 0.0
        %1329 = vmatpush2.msra.mxu0 0.0
        %1330 = vmatprep.subr.mxu0 0.0
        %1331 = vmatpush2.msra.mxu0 0.0
        %1332 = vmatprep.subr.mxu0 0.0
        %1333 = vmatpush2.msra.mxu0 0.0
        %1334 = vmatprep.subr.mxu0 0.0
        %1335 = vmatpush2.msra.mxu0 0.0
        %1336 = vmatprep.subr.mxu0 0.0
        %1337 = vmatpush2.msra.mxu0 0.0
        %1338 = vmatprep.subr.mxu0 0.0
        %1339 = vmatpush2.msra.mxu0 0.0
        %1340 = vmatprep.subr.mxu0 0.0
        %1341 = vmatpush2.msra.mxu0 0.0
        %1342 = vmatprep.subr.mxu0 0.0
        %1343 = vmatpush2.msra.mxu0 0.0
        %1344 = vmatprep.subr.mxu0 0.0
        %1345 = vmatpush2.msra.mxu0 0.0
        %1346 = vmatprep.subr.mxu0 0.0
        %1347 = vmatpush2.msra.mxu0 0.0
        %1348 = vmatprep.subr.mxu0 0.0
        %1349 = vmatpush2.msra.mxu0 0.0
        %1350 = vmatprep.subr.mxu0 0.0
        %1351 = vmatpush2.msra.mxu0 0.0
        %1352 = vmatprep.subr.mxu0 0.0
        %1353 = vmatpush2.msra.mxu0 0.0
        %1354 = vmatprep.mubr.f32.mxu0 0.0
        %1355 = vmatmul.mubr.f32.gmra.mxu0 %v1217
        %v1356 = vpop.f32.mrf.mxu0
        %v1357 = vadd.f32 %v1214, %v1356
        %v1358 = vpop.f32.mrf.mxu0
        %v1359 = vadd.f32 %v1214, %v1358
        %1360 = vdwg.mxu0
        %v1361 = vmax.f32 %v1286, 0.0
        %v1362 = vmax.f32 %v1288, 0.0
        %v1363 = vmax.f32 %v1357, 0.0
        %v1364 = vmax.f32 %v1359, 0.0
        %v1365 = vld [vmem:[%s8] sm:$0x1]
        %v1366 = vld [vmem:[#allocation3] sm:$0x1]
        %1368 = vset.pattern.permute.xlu0 0
        %1369 = vperm.xlu0 %1368, %v1366
        %v1370 = vpop.permute.xlu0 %1369
        %v1372 = vlaneseq
        %v1373 = vshrl.u32 %v1372, 7
        %v1374 = vsub.s32 0, %v1373
        %v1375 = vrot.slane %v1370, %v1374
        %vm1376 = vcmask 64512
        %v1378 = vsel %vm1376, %v1365, 0
        %1380 = vmatprep.subr.mxu0 0.0
        %1381 = vmatpush1.msra.mxu0 0.0
        %1382 = vmatprep.subr.mxu0 0.0
        %1383 = vmatpush1.msra.mxu0 0.0
        %1384 = vmatprep.subr.mxu0 0.0
        %1385 = vmatpush1.msra.mxu0 0.0
        %1386 = vmatprep.subr.mxu0 0.0
        %1387 = vmatpush1.msra.mxu0 0.0
        %1388 = vmatprep.subr.mxu0 0.0
        %1389 = vmatpush1.msra.mxu0 0.0
        %1390 = vmatprep.subr.mxu0 0.0
        %1391 = vmatpush1.msra.mxu0 0.0
        %1392 = vmatprep.subr.mxu0 0.0
        %1393 = vmatpush1.msra.mxu0 0.0
        %1394 = vmatprep.subr.mxu0 0.0
        %1395 = vmatpush1.msra.mxu0 0.0
        %1396 = vmatprep.subr.mxu0 0.0
        %1397 = vmatpush1.msra.mxu0 0.0
        %1398 = vmatprep.subr.mxu0 0.0
        %1399 = vmatpush1.msra.mxu0 0.0
        %1400 = vmatprep.subr.mxu0 0.0
        %1401 = vmatpush1.msra.mxu0 0.0
        %1402 = vmatprep.subr.mxu0 0.0
        %1403 = vmatpush1.msra.mxu0 0.0
        %1404 = vmatprep.subr.mxu0 0.0
        %1405 = vmatpush1.msra.mxu0 0.0
        %1406 = vmatprep.subr.mxu0 0.0
        %1407 = vmatpush1.msra.mxu0 0.0
        %1408 = vmatprep.subr.mxu0 0.0
        %1409 = vmatpush1.msra.mxu0 0.0
        %1410 = vmatprep.subr.mxu0 %v1362
        %1411 = vmatpush1.msra.mxu0 %v1361
        %1412 = vmatprep.subr.mxu0 0.0
        %1413 = vmatpush2.msra.mxu0 0.0
        %1414 = vmatprep.subr.mxu0 0.0
        %1415 = vmatpush2.msra.mxu0 0.0
        %1416 = vmatprep.subr.mxu0 0.0
        %1417 = vmatpush2.msra.mxu0 0.0
        %1418 = vmatprep.subr.mxu0 0.0
        %1419 = vmatpush2.msra.mxu0 0.0
        %1420 = vmatprep.subr.mxu0 0.0
        %1421 = vmatpush2.msra.mxu0 0.0
        %1422 = vmatprep.subr.mxu0 0.0
        %1423 = vmatpush2.msra.mxu0 0.0
        %1424 = vmatprep.subr.mxu0 0.0
        %1425 = vmatpush2.msra.mxu0 0.0
        %1426 = vmatprep.subr.mxu0 0.0
        %1427 = vmatpush2.msra.mxu0 0.0
        %1428 = vmatprep.subr.mxu0 0.0
        %1429 = vmatpush2.msra.mxu0 0.0
        %1430 = vmatprep.subr.mxu0 0.0
        %1431 = vmatpush2.msra.mxu0 0.0
        %1432 = vmatprep.subr.mxu0 0.0
        %1433 = vmatpush2.msra.mxu0 0.0
        %1434 = vmatprep.subr.mxu0 0.0
        %1435 = vmatpush2.msra.mxu0 0.0
        %1436 = vmatprep.subr.mxu0 0.0
        %1437 = vmatpush2.msra.mxu0 0.0
        %1438 = vmatprep.subr.mxu0 0.0
        %1439 = vmatpush2.msra.mxu0 0.0
        %1440 = vmatprep.subr.mxu0 0.0
        %1441 = vmatpush2.msra.mxu0 0.0
        %1442 = vmatprep.subr.mxu0 0.0
        %1443 = vmatpush2.msra.mxu0 0.0
        %1444 = vmatprep.mubr.f32.mxu0 0.0
        %1445 = vmatmul.mubr.f32.gmra.mxu0 %v1378
        %v1446 = vpop.f32.mrf.mxu0
        %v1447 = vadd.f32 %v1375, %v1446
        %v1448 = vpop.f32.mrf.mxu0
        %v1449 = vadd.f32 %v1375, %v1448
        %1450 = vdwg.mxu0
        %1451 = vmatprep.subr.mxu0 0.0
        %1452 = vmatpush1.msra.mxu0 0.0
        %1453 = vmatprep.subr.mxu0 0.0
        %1454 = vmatpush1.msra.mxu0 0.0
        %1455 = vmatprep.subr.mxu0 0.0
        %1456 = vmatpush1.msra.mxu0 0.0
        %1457 = vmatprep.subr.mxu0 0.0
        %1458 = vmatpush1.msra.mxu0 0.0
        %1459 = vmatprep.subr.mxu0 0.0
        %1460 = vmatpush1.msra.mxu0 0.0
        %1461 = vmatprep.subr.mxu0 0.0
        %1462 = vmatpush1.msra.mxu0 0.0
        %1463 = vmatprep.subr.mxu0 0.0
        %1464 = vmatpush1.msra.mxu0 0.0
        %1465 = vmatprep.subr.mxu0 0.0
        %1466 = vmatpush1.msra.mxu0 0.0
        %1467 = vmatprep.subr.mxu0 0.0
        %1468 = vmatpush1.msra.mxu0 0.0
        %1469 = vmatprep.subr.mxu0 0.0
        %1470 = vmatpush1.msra.mxu0 0.0
        %1471 = vmatprep.subr.mxu0 0.0
        %1472 = vmatpush1.msra.mxu0 0.0
        %1473 = vmatprep.subr.mxu0 0.0
        %1474 = vmatpush1.msra.mxu0 0.0
        %1475 = vmatprep.subr.mxu0 0.0
        %1476 = vmatpush1.msra.mxu0 0.0
        %1477 = vmatprep.subr.mxu0 0.0
        %1478 = vmatpush1.msra.mxu0 0.0
        %1479 = vmatprep.subr.mxu0 0.0
        %1480 = vmatpush1.msra.mxu0 0.0
        %1481 = vmatprep.subr.mxu0 %v1364
        %1482 = vmatpush1.msra.mxu0 %v1363
        %1483 = vmatprep.subr.mxu0 0.0
        %1484 = vmatpush2.msra.mxu0 0.0
        %1485 = vmatprep.subr.mxu0 0.0
        %1486 = vmatpush2.msra.mxu0 0.0
        %1487 = vmatprep.subr.mxu0 0.0
        %1488 = vmatpush2.msra.mxu0 0.0
        %1489 = vmatprep.subr.mxu0 0.0
        %1490 = vmatpush2.msra.mxu0 0.0
        %1491 = vmatprep.subr.mxu0 0.0
        %1492 = vmatpush2.msra.mxu0 0.0
        %1493 = vmatprep.subr.mxu0 0.0
        %1494 = vmatpush2.msra.mxu0 0.0
        %1495 = vmatprep.subr.mxu0 0.0
        %1496 = vmatpush2.msra.mxu0 0.0
        %1497 = vmatprep.subr.mxu0 0.0
        %1498 = vmatpush2.msra.mxu0 0.0
        %1499 = vmatprep.subr.mxu0 0.0
        %1500 = vmatpush2.msra.mxu0 0.0
        %1501 = vmatprep.subr.mxu0 0.0
        %1502 = vmatpush2.msra.mxu0 0.0
        %1503 = vmatprep.subr.mxu0 0.0
        %1504 = vmatpush2.msra.mxu0 0.0
        %1505 = vmatprep.subr.mxu0 0.0
        %1506 = vmatpush2.msra.mxu0 0.0
        %1507 = vmatprep.subr.mxu0 0.0
        %1508 = vmatpush2.msra.mxu0 0.0
        %1509 = vmatprep.subr.mxu0 0.0
        %1510 = vmatpush2.msra.mxu0 0.0
        %1511 = vmatprep.subr.mxu0 0.0
        %1512 = vmatpush2.msra.mxu0 0.0
        %1513 = vmatprep.subr.mxu0 0.0
        %1514 = vmatpush2.msra.mxu0 0.0
        %1515 = vmatprep.mubr.f32.mxu0 0.0
        %1516 = vmatmul.mubr.f32.gmra.mxu0 %v1378
        %v1517 = vpop.f32.mrf.mxu0
        %v1518 = vadd.f32 %v1375, %v1517
        %v1519 = vpop.f32.mrf.mxu0
        %v1520 = vadd.f32 %v1375, %v1519
        %1521 = vdwg.mxu0
        %v1522 = vsub.f32 0.0, %v1447
        %v1523 = vsub.f32 0.0, %v1449
        %v1524 = vsub.f32 0.0, %v1518
        %v1525 = vsub.f32 0.0, %v1520
        %v1526 = vmul.f32 %v1522, 1.442695
        %v1527 = vpow.pop %v1526
        %v1528 = vmul.f32 %v1523, 1.442695
        %v1529 = vpow.pop %v1528
        %v1530 = vmul.f32 %v1524, 1.442695
        %v1531 = vpow.pop %v1530
        %v1532 = vmul.f32 %v1525, 1.442695
        %v1533 = vpow.pop %v1532
        %v1534 = vadd.f32 %v1527, 1.0
        %v1535 = vadd.f32 %v1529, 1.0
        %v1536 = vadd.f32 %v1531, 1.0
        %v1537 = vadd.f32 %v1533, 1.0
        %v1538 = vrcp.pop %v1534
        %v1539 = vrcp.pop %v1535
        %v1540 = vrcp.pop %v1536
        %v1541 = vrcp.pop %v1537
        %v1542 = vadd.f32 %v1538, 1.0
        %v1543 = vadd.f32 %v1539, 1.0
        %v1544 = vadd.f32 %v1540, 1.0
        %v1545 = vadd.f32 %v1541, 1.0
        %v1546 = vlaneseq
        %v1547 = vshrl.u32 %v1546, 7
        %v1548 = vsub.s32 0, %v1547
        %v1549 = vrot.slane %v1542, %v1548
        %v1550 = vlaneseq
        %v1551 = vshrl.u32 %v1550, 7
        %v1552 = vsub.s32 0, %v1551
        %v1553 = vrot.slane %v1543, %v1552
        %v1554 = vlaneseq
        %v1555 = vshrl.u32 %v1554, 7
        %v1556 = vsub.s32 0, %v1555
        %v1557 = vrot.slane %v1544, %v1556
        %v1558 = vlaneseq
        %v1559 = vshrl.u32 %v1558, 7
        %v1560 = vsub.s32 0, %v1559
        %v1561 = vrot.slane %v1545, %v1560
        %v1562 = vmul.f32 %v408, %v1549
        %v1563 = vmul.f32 %v409, %v1553
        %v1564 = vmul.f32 %v410, %v1557
        %v1565 = vmul.f32 %v411, %v1561
        %v1566 = vmul.f32 %v412, %v1549
        %v1567 = vmul.f32 %v413, %v1553
        %v1568 = vmul.f32 %v414, %v1557
        %v1569 = vmul.f32 %v415, %v1561
        %v1570 = vmul.f32 %v416, %v1549
        %v1571 = vmul.f32 %v417, %v1553
        %v1572 = vmul.f32 %v418, %v1557
        %v1573 = vmul.f32 %v419, %v1561
        %v1574 = vmul.f32 %v420, %v1549
        %v1575 = vmul.f32 %v421, %v1553
        %v1576 = vmul.f32 %v422, %v1557
        %v1577 = vmul.f32 %v423, %v1561
        %1578 = vst [vmem:[%s405] sm:$0xff] %v1562
        %1579 = vst [vmem:[%s405 + $0x8] sm:$0xff] %v1563
        %1580 = vst [vmem:[%s405 + $0x10] sm:$0xff] %v1564
        %1581 = vst [vmem:[%s405 + $0x18] sm:$0xff] %v1565
        %1582 = vst [vmem:[%s405 + $0x20] sm:$0xff] %v1566
        %1583 = vst [vmem:[%s405 + $0x28] sm:$0xff] %v1567
        %1584 = vst [vmem:[%s405 + $0x30] sm:$0xff] %v1568
        %1585 = vst [vmem:[%s405 + $0x38] sm:$0xff] %v1569
        %1586 = vst [vmem:[%s405 + $0x40] sm:$0xff] %v1570
        %1587 = vst [vmem:[%s405 + $0x48] sm:$0xff] %v1571
        %1588 = vst [vmem:[%s405 + $0x50] sm:$0xff] %v1572
        %1589 = vst [vmem:[%s405 + $0x58] sm:$0xff] %v1573
        %1590 = vst [vmem:[%s405 + $0x60] sm:$0xff] %v1574
        %1591 = vst [vmem:[%s405 + $0x68] sm:$0xff] %v1575
        %1592 = vst [vmem:[%s405 + $0x70] sm:$0xff] %v1576
        %1593 = vst [vmem:[%s405 + $0x78] sm:$0xff] %v1577
        %s1594 = sand.u32 %s246, 1
        %s1595 = sand.u32 %s246, 1
        %s1596 = smul.addr %s1595, 128
        %s1597 = scalar_lea.vmem [#allocation5], %s1596
        // Predicated region
        $region84: #{spatial_gate_forward.1} parent=78 // pred_check
          %p1598 = pneg %p256
        $region85: #{spatial_gate_forward.1} parent=78 // pred_check_branch
          %1600 = sbr.rel (%p1598) target = $region87
        $region86: #{spatial_gate_forward.1} parent=78 // pred_region
          %s1601 = smul.u32 4, %s23
          %s1602 = smul.addr %s1601, 8
          %s1603 = scalar_lea.vmem %s10, %s1602
          // Predicated region
          $region88: #{spatial_gate_forward.1} parent=86 // pred_check
            _
          $region89: #{spatial_gate_forward.1} parent=86 // pred_check_branch
            %1605 = sbr.rel (0) target = $region91
          $region90: #{spatial_gate_forward.1} parent=86 // pred_region
            // Predicated region
            $region92: #{spatial_gate_forward.1} parent=90 // pred_check
              _
            $region93: #{spatial_gate_forward.1} parent=90 // pred_check_branch
              %1607 = sbr.rel (0) target = $region95
            $region94: #{spatial_gate_forward.1} parent=90 // pred_region
              loop: start=0, step=1, limit=1
              $region96: #{spatial_gate_forward.1} parent=94 // loop_pre_header
                _
              $region97: #{spatial_gate_forward.1} parent=94 // loop_header
                %s1609 = sphi 0, %s1613
                %p1610 = scmp.ge.s32.totalorder %s1609, 1
                %s1614 = sphi %s1597, %s1597
                %s1615 = sphi %s1603, %s1603
              $region98: #{spatial_gate_forward.1} parent=94 // loop_header_branch
                %1612 = sbr.rel (%p1610) target = $region102
              $region99: #{spatial_gate_forward.1} parent=94 // loop_body
                %v1616 = vld [vmem:[%s1614] sm:$0xff]
                %1617 = vst [vmem:[%s1615] sm:$0xff] %v1616
                %v1618 = vld [vmem:[%s1614 + $0x8] sm:$0xff]
                %1619 = vst [vmem:[%s1615 + $0x8] sm:$0xff] %v1618
                %v1620 = vld [vmem:[%s1614 + $0x10] sm:$0xff]
                %1621 = vst [vmem:[%s1615 + $0x10] sm:$0xff] %v1620
                %v1622 = vld [vmem:[%s1614 + $0x18] sm:$0xff]
                %1623 = vst [vmem:[%s1615 + $0x18] sm:$0xff] %v1622
                %v1624 = vld [vmem:[%s1614 + $0x20] sm:$0xff]
                %1625 = vst [vmem:[%s1615 + $0x40] sm:$0xff] %v1624
                %v1626 = vld [vmem:[%s1614 + $0x28] sm:$0xff]
                %1627 = vst [vmem:[%s1615 + $0x48] sm:$0xff] %v1626
                %v1628 = vld [vmem:[%s1614 + $0x30] sm:$0xff]
                %1629 = vst [vmem:[%s1615 + $0x50] sm:$0xff] %v1628
                %v1630 = vld [vmem:[%s1614 + $0x38] sm:$0xff]
                %1631 = vst [vmem:[%s1615 + $0x58] sm:$0xff] %v1630
                %v1632 = vld [vmem:[%s1614 + $0x40] sm:$0xff]
                %1633 = vst [vmem:[%s1615 + $0x80] sm:$0xff] %v1632
                %v1634 = vld [vmem:[%s1614 + $0x48] sm:$0xff]
                %1635 = vst [vmem:[%s1615 + $0x88] sm:$0xff] %v1634
                %v1636 = vld [vmem:[%s1614 + $0x50] sm:$0xff]
                %1637 = vst [vmem:[%s1615 + $0x90] sm:$0xff] %v1636
                %v1638 = vld [vmem:[%s1614 + $0x58] sm:$0xff]
                %1639 = vst [vmem:[%s1615 + $0x98] sm:$0xff] %v1638
                %v1640 = vld [vmem:[%s1614 + $0x60] sm:$0xff]
                %1641 = vst [vmem:[%s1615 + $0xc0] sm:$0xff] %v1640
                %v1642 = vld [vmem:[%s1614 + $0x68] sm:$0xff]
                %1643 = vst [vmem:[%s1615 + $0xc8] sm:$0xff] %v1642
                %v1644 = vld [vmem:[%s1614 + $0x70] sm:$0xff]
                %1645 = vst [vmem:[%s1615 + $0xd0] sm:$0xff] %v1644
                %v1646 = vld [vmem:[%s1614 + $0x78] sm:$0xff]
                %1647 = vst [vmem:[%s1615 + $0xd8] sm:$0xff] %v1646
              $region100: #{spatial_gate_forward.1} parent=94 // loop_footer
                %s1613 = sadd.s32 1, %s1609
              $region101: #{spatial_gate_forward.1} parent=94 // loop_footer_branch
                %1608 = sbr.rel target = $region97
              $region102: #{spatial_gate_forward.1} parent=94 // loop_exit
                _
            $region95: #{spatial_gate_forward.1} parent=90 // pred_fallthru
              _
            // Predicated region
            $region103: #{spatial_gate_forward.1} parent=90 // pred_check
              _
            $region104: #{spatial_gate_forward.1} parent=90 // pred_check_branch
              %1649 = sbr.rel target = $region106
            $region105: #{spatial_gate_forward.1} parent=90 // pred_region
              _
            $region106: #{spatial_gate_forward.1} parent=90 // pred_fallthru
              _
          $region91: #{spatial_gate_forward.1} parent=86 // pred_fallthru
            _
          %1650 = vnop
        $region87: #{spatial_gate_forward.1} parent=78 // pred_fallthru
          _
      $region79: #{spatial_gate_forward.1} parent=5 // pred_fallthru
        _
      %p1651 = scmp.le.s32.totalorder 2, %s18
      // Predicated region
      $region107: #{spatial_gate_forward.1} parent=5 // pred_check
        %p1652 = pneg %p1651
      $region108: #{spatial_gate_forward.1} parent=5 // pred_check_branch
        %1654 = sbr.rel (%p1652) target = $region110
      $region109: #{spatial_gate_forward.1} parent=5 // pred_region
        %s1655 = ssub.s32 %s18, 2
        // Predicated region
        $region111: #{spatial_gate_forward.1} parent=109 // pred_check
          %p1656 = pneg %p262
        $region112: #{spatial_gate_forward.1} parent=109 // pred_check_branch
          %1658 = sbr.rel (%p1656) target = $region114
        $region113: #{spatial_gate_forward.1} parent=109 // pred_region
          %s1659 = sand.u32 %s247, 1
          %s1660 = sand.u32 %s247, 1
          %s1661 = smul.addr %s1660, 128
          %s1662 = scalar_lea.vmem [#allocation5], %s1661
        $region114: #{spatial_gate_forward.1} parent=109 // pred_fallthru
          _
      $region110: #{spatial_gate_forward.1} parent=5 // pred_fallthru
        _
    $region6: #{spatial_gate_forward.1} parent=1 // loop_footer
      %s22 = sadd.s32 1, %s18
    $region7: #{spatial_gate_forward.1} parent=1 // loop_footer_branch
      %17 = sbr.rel target = $region3
    $region8: #{spatial_gate_forward.1} parent=1 // loop_exit
      _

</llo_original>
